<compile_context>
chip_gen: v7x
topology: tpu7x:2x2x1
jax: 0.10.0
libtpu: 0.0.40
codegen_flags: <defaults>
</compile_context>

<pallas_src>
import functools

import jax
import jax.numpy as jnp
import numpy as np
from jax.experimental import pallas as pl
from jax.experimental.pallas import tpu as pltpu


def _round_up(n, m):
    return -(-n // m) * m


def _vmem_limit_bytes():
    """Generation-aware scoped VMEM limit (v5e/v6e 128 MiB, v7x 64 MiB)."""
    try:
        cap = pltpu.get_tpu_info().vmem_capacity_bytes
    except Exception:  # older jax / query unavailable -> conservative default
        cap = 64 * 1024 * 1024
    # leave ~25% headroom for Mosaic-internal scratch; cap at ~100 MiB
    return int(min(cap * 3 // 4, 100 * 1024 * 1024))


def _pick_tile_rows(h_out, w_out, c_in, vmem_limit):
    """Largest output-row tile whose VMEM working set fits ~1/3 of the limit.

    Accounts for Mosaic's 128-lane minor padding and double buffering of the
    streamed blocks (review: generation-specific tiles via the vmem limit).
    """
    lanes = 128
    sub = lambda n: _round_up(max(n, 1), 16)          # bf16 sublane padding
    k_pad = _round_up(9 * c_in, lanes)
    per_row = (2 * 2 * sub(w_out + 1) * lanes         # phase input, 2 buffers, bf16
               + 2 * sub(w_out) * k_pad               # im2col LHS (VMEM value), bf16
               + 4 * sub(w_out) * lanes               # f32 GEMM accumulator
               + 2 * 2 * sub(w_out) * lanes)          # output block, 2 buffers, bf16
    tile = max(1, (vmem_limit // 3) // per_row)
    return int(min(tile, h_out, 256))


# ----------------------------------------------------------------------------
# Pallas kernel: fused 3x3/stride-2 conv + bias + ReLU for one (batch, row-tile)
# ----------------------------------------------------------------------------
def _conv3x3_s2_kernel(ph_ref, w_ref, b_ref, o_ref, *, tile_h, w_out, c_in):
    """One (batch, output-row-tile) grid step.

    ph_ref: (1, 1, tile_h+1, w_out+1, 4*c_in) bf16
            4-phase space-to-depth split of the zero-padded input with the
            phase folded into the minor dim: lane p*c_in + c at half pixel
            (i, j) holds padded_x[2*i + p//2, 2*j + p%2, c].
    w_ref : (9*c_in, c_out) bf16 -- contraction dim ordered (ki, kj, c).
    b_ref : (1, c_out) f32.
    o_ref : (1, tile_h, w_out, c_out) bf16.
    """
    # Build the (tile_h, w_out, 9*c_in) im2col tile from 9 static lane slices
    # (output (h, j), tap (ki, kj) reads padded pixel (2h+ki, 2j+kj) ==
    #  phase 2*(ki%2)+(kj%2), half-row h + ki//2, half-col j + kj//2).
    parts = []
    for ki in range(3):
        di, rp = ki // 2, ki % 2
        for kj in range(3):
            dj, cp = kj // 2, kj % 2
            p = 2 * rp + cp
            parts.append(ph_ref[0, 0, di:di + tile_h, dj:dj + w_out,
                                 p * c_in:(p + 1) * c_in])
    lhs = jnp.concatenate(parts, axis=-1).reshape(tile_h * w_out, 9 * c_in)

    # Single lane-dense MXU GEMM (K = 9*Cin), f32 accumulate; bias + ReLU in
    # f32 applied once per tile; bf16 masked store of the valid channels only.
    acc = jnp.dot(lhs, w_ref[...], preferred_element_type=jnp.float32)
    out = jnp.maximum(acc + b_ref[...], 0.0)
    o_ref[0] = out.reshape(tile_h, w_out, -1).astype(o_ref.dtype)


def conv3x3_s2_relu(x_nhwc, w_oihw, b_vec):
    """3x3 conv, stride 2, pad 1, + ReLU.

    x: (B, H, W, Cin) f32/bf16, w: (Cout, Cin, 3, 3), b: (Cout,).
    Returns (B, Hout, Wout, Cout) bf16 (f32 accumulate / bias / ReLU).
    """
    B, H, W, c_in = x_nhwc.shape
    c_out = w_oihw.shape[0]
    h_out = (H - 1) // 2 + 1
    w_out = (W - 1) // 2 + 1

    vmem_limit = _vmem_limit_bytes()
    tile_h = _pick_tile_rows(h_out, w_out, c_in, vmem_limit)
    n_tiles = pl.cdiv(h_out, tile_h)
    h_pad = n_tiles * tile_h                      # output rows incl. tile padding

    # Zero-pad (conv pad=1 plus alignment) and 4-phase space-to-depth split,
    # with (phase, Cin) folded into the minor dim -> 4*Cin-wide contiguous DMA
    # chunks; ~1x traffic (no im2col materialisation in HBM).
    hh, wh = h_pad + 1, w_out + 1
    xp = jnp.pad(x_nhwc.astype(jnp.bfloat16),
                 ((0, 0), (1, 2 * hh - H - 1), (1, 2 * wh - W - 1), (0, 0)))
    ph = xp.reshape(B, hh, 2, wh, 2, c_in).transpose(0, 1, 3, 2, 4, 5)
    ph = ph.reshape(B, hh, wh, 4 * c_in)

    # Per-row-tile view with a 1-half-row halo (duplicates ~1/tile_h of rows).
    rows = (jnp.arange(n_tiles)[:, None] * tile_h
            + jnp.arange(tile_h + 1)[None, :])            # (n_tiles, tile_h+1)
    ph_tiles = ph[:, rows]                                 # (B, n_tiles, th+1, wh, 4*Cin)

    # GEMM weights: contraction dim ordered (ki, kj, c); bias kept in f32.
    w_gemm = jnp.transpose(w_oihw, (2, 3, 1, 0)).reshape(9 * c_in, c_out)
    w_gemm = w_gemm.astype(jnp.bfloat16)
    b_row = b_vec.reshape(1, c_out).astype(jnp.float32)

    flops = 2 * B * h_pad * w_out * 9 * c_in * c_out
    bytes_accessed = (ph_tiles.size * 2 + w_gemm.size * 2 + b_row.size * 4
                      + B * h_pad * w_out * c_out * 2)

    kernel = functools.partial(_conv3x3_s2_kernel,
                               tile_h=tile_h, w_out=w_out, c_in=c_in)

    # TODO(synk): fuse layer1..layer4 into a single pallas_call with
    # VMEM-resident per-row-tile intermediates (channels <= 32, spatial halves
    # per layer) to remove the remaining intermediate-feature-map HBM round
    # trips entirely (biggest remaining win, largest on v5e).
    out = pl.pallas_call(
        kernel,
        out_shape=jax.ShapeDtypeStruct((B, h_pad, w_out, c_out), jnp.bfloat16),
        grid=(B, n_tiles),
        in_specs=[
            pl.BlockSpec((1, 1, tile_h + 1, wh, 4 * c_in),
                         lambda b, t: (b, t, 0, 0, 0)),
            # constant index maps -> weights/bias stay resident in VMEM
            pl.BlockSpec((9 * c_in, c_out), lambda b, t: (0, 0)),
            pl.BlockSpec((1, c_out), lambda b, t: (0, 0)),
        ],
        out_specs=pl.BlockSpec((1, tile_h, w_out, c_out),
                               lambda b, t: (b, t, 0, 0)),
        compiler_params=pltpu.CompilerParams(
            dimension_semantics=("parallel", "parallel"),   # megacore on v7x
            vmem_limit_bytes=vmem_limit),
        cost_estimate=pl.CostEstimate(
            flops=flops, transcendentals=0, bytes_accessed=bytes_accessed),
    )(ph_tiles, w_gemm, b_row)

    return out[:, :h_out]                          # drop tile-padding rows


# ----------------------------------------------------------------------------
# Mask resize: F.interpolate(m[None].float(), size=(Hf,Wf)).to(bool)[0]
# (default mode='nearest': src = floor(dst * in / out))
# ----------------------------------------------------------------------------
def resize_mask_nearest(mask_bhw, h_out, w_out):
    # TODO(synk): nearest-neighbour mask resize is a pure index gather (no
    # compute hot path) -- kept as JAX glue rather than a Pallas kernel.
    B, H, W = mask_bhw.shape
    rows = (jnp.arange(h_out) * H) // h_out
    cols = (jnp.arange(w_out) * W) // w_out
    return mask_bhw[:, rows][:, :, cols]


# ----------------------------------------------------------------------------
# BackboneBase
# ----------------------------------------------------------------------------
_LAYERS = ("layer1", "layer2", "layer3", "layer4")
_CHANNELS = (3, 8, 16, 32, 32)
NUM_CHANNELS = _CHANNELS[-1]


def init_backbone_params(key):
    params = {}
    for li, name in enumerate(_LAYERS):
        cin, cout = _CHANNELS[li], _CHANNELS[li + 1]
        kw_, kb_ = jax.random.split(jax.random.fold_in(key, li))
        fan_in = cin * 9
        w = jax.random.normal(kw_, (cout, cin, 3, 3), jnp.float32) / jnp.sqrt(fan_in)
        b = 0.01 * jax.random.normal(kb_, (cout,), jnp.float32)
        params[name] = (w, b)
    return params


def backbone_base_forward(params, tensor_nchw, mask_bhw, return_interm_layers=False):
    """Mirrors BackboneBase.forward(tensor_list) for NestedTensor(tensor, mask).

    Returns dict name -> (features NCHW float32, mask (B, Hf, Wf) bool).
    """
    # NOTE: IntermediateLayerGetter / requires_grad_ freezing in __init__ are
    # parameter bookkeeping only; they do not affect forward compute.
    x = jnp.transpose(tensor_nchw, (0, 2, 3, 1))   # NCHW -> NHWC
    feats = {}
    for name in _LAYERS:
        w, b = params[name]
        x = conv3x3_s2_relu(x, w, b)               # bf16 activations between layers
        feats[name] = x

    if return_interm_layers:
        return_layers = {"layer1": "0", "layer2": "1", "layer3": "2", "layer4": "3"}
    else:
        return_layers = {"layer4": "0"}

    out = {}
    for lname, oname in return_layers.items():
        f = feats[lname]                           # (B, Hf, Wf, C) bf16
        _, hf, wf, _ = f.shape
        m = resize_mask_nearest(mask_bhw, hf, wf)
        out[oname] = (jnp.transpose(f, (0, 3, 1, 2)).astype(jnp.float32), m)
    return out


# ----------------------------------------------------------------------------
# Pure-JAX reference (bf16 weights/activations, f32 accumulate) for self-check
# ----------------------------------------------------------------------------
def _conv_ref(x_nhwc, w_oihw, b_vec):
    x = x_nhwc.astype(jnp.bfloat16).astype(jnp.float32)
    w = jnp.transpose(w_oihw, (2, 3, 1, 0)).astype(jnp.bfloat16).astype(jnp.float32)
    y = jax.lax.conv_general_dilated(
        x, w, window_strides=(2, 2), padding=((1, 1), (1, 1)),
        dimension_numbers=("NHWC", "HWIO", "NHWC"))
    return jnp.maximum(y + b_vec, 0.0)


if __name__ == "__main__":
    key = jax.random.PRNGKey(0)
    k_param, k_x, k_m = jax.random.split(key, 3)

    B, Cin, H, W = 2, 3, 16, 16
    tensor = jax.random.normal(k_x, (B, Cin, H, W), jnp.float32)
    mask = jax.random.uniform(k_m, (B, H, W)) > 0.8   # True = padded pixel

    params = init_backbone_params(k_param)

    fwd = jax.jit(functools.partial(backbone_base_forward,
                                    return_interm_layers=False))
    out = jax.block_until_ready(fwd(params, tensor, mask))

    feat, m0 = out["0"]
    assert feat.shape == (B, NUM_CHANNELS, 1, 1), feat.shape
    assert m0.shape == (B, 1, 1) and m0.dtype == jnp.bool_, (m0.shape, m0.dtype)

    # Intermediate-layers path (layer1..layer4 -> '0'..'3').
    fwd_i = jax.jit(functools.partial(backbone_base_forward,
                                      return_interm_layers=True))
    out_i = jax.block_until_ready(fwd_i(params, tensor, mask))
    assert set(out_i.keys()) == {"0", "1", "2", "3"}
    f1, m1 = out_i["0"]
    assert f1.shape == (B, _CHANNELS[1], 8, 8), f1.shape
    assert m1.shape == (B, 8, 8), m1.shape

    # Numerical check of the Pallas conv stack against the pure-JAX reference.
    x_ref = jnp.transpose(tensor, (0, 2, 3, 1))
    for li, name in enumerate(_LAYERS):
        w, b = params[name]
        x_ref = _conv_ref(x_ref, w, b).astype(jnp.bfloat16).astype(jnp.float32)
        got = np.asarray(out_i[str(li)][0])
        want = np.asarray(jnp.transpose(x_ref, (0, 3, 1, 2)))
        np.testing.assert_allclose(got, want, atol=2e-2, rtol=2e-2)

    print("KERNEL_OK")
</pallas_src>

<mosaic_0001>
module attributes {stable_mosaic.version = 11 : i64} {
  func.func @_conv3x3_s2_kernel(%arg0: i32, %arg1: i32, %arg2: memref<1x1x9x9x12xbf16, #tpu.memory_space<vmem>>, %arg3: memref<27x8xbf16, #tpu.memory_space<vmem>>, %arg4: memref<1x8xf32, #tpu.memory_space<vmem>>, %arg5: memref<1x8x8x8xbf16, #tpu.memory_space<vmem>>) attributes {dimension_semantics = [#tpu.dimension_semantics<parallel>, #tpu.dimension_semantics<parallel>], iteration_bounds = array<i64: 2, 1>, scalar_prefetch = 0 : i64, scratch_operands = 0 : i64, tpu.core_type = #tpu.core_type<tc>, window_params = [{transform_indices = @transform_0, window_bounds = array<i64: 1, 1, 9, 9, 12>}, {pipeline_mode = #tpu.pipeline_mode<synchronous>, transform_indices = @transform_1, window_bounds = array<i64: 27, 8>}, {pipeline_mode = #tpu.pipeline_mode<synchronous>, transform_indices = @transform_2, window_bounds = array<i64: 1, 8>}, {transform_indices = @transform_3, window_bounds = array<i64: 1, 8, 8, 8>}]} {
    %c0 = arith.constant 0 : index
    %c0_0 = arith.constant 0 : index
    %c0_1 = arith.constant 0 : index
    %c0_2 = arith.constant 0 : index
    %c0_3 = arith.constant 0 : index
    %0 = vector.load %arg2[%c0, %c0_0, %c0_1, %c0_2, %c0_3] : memref<1x1x9x9x12xbf16, #tpu.memory_space<vmem>>, vector<1x1x8x8x3xbf16>
    %1 = vector.shape_cast %0 : vector<1x1x8x8x3xbf16> to vector<8x8x3xbf16>
    %c0_4 = arith.constant 0 : index
    %c0_5 = arith.constant 0 : index
    %c0_6 = arith.constant 0 : index
    %c0_7 = arith.constant 0 : index
    %c3 = arith.constant 3 : index
    %2 = vector.load %arg2[%c0_4, %c0_5, %c0_6, %c0_7, %c3] : memref<1x1x9x9x12xbf16, #tpu.memory_space<vmem>>, vector<1x1x8x8x3xbf16>
    %3 = vector.shape_cast %2 : vector<1x1x8x8x3xbf16> to vector<8x8x3xbf16>
    %c0_8 = arith.constant 0 : index
    %c0_9 = arith.constant 0 : index
    %c0_10 = arith.constant 0 : index
    %c1 = arith.constant 1 : index
    %c0_11 = arith.constant 0 : index
    %4 = vector.load %arg2[%c0_8, %c0_9, %c0_10, %c1, %c0_11] : memref<1x1x9x9x12xbf16, #tpu.memory_space<vmem>>, vector<1x1x8x8x3xbf16>
    %5 = vector.shape_cast %4 : vector<1x1x8x8x3xbf16> to vector<8x8x3xbf16>
    %c0_12 = arith.constant 0 : index
    %c0_13 = arith.constant 0 : index
    %c0_14 = arith.constant 0 : index
    %c0_15 = arith.constant 0 : index
    %c6 = arith.constant 6 : index
    %6 = vector.load %arg2[%c0_12, %c0_13, %c0_14, %c0_15, %c6] : memref<1x1x9x9x12xbf16, #tpu.memory_space<vmem>>, vector<1x1x8x8x3xbf16>
    %7 = vector.shape_cast %6 : vector<1x1x8x8x3xbf16> to vector<8x8x3xbf16>
    %c0_16 = arith.constant 0 : index
    %c0_17 = arith.constant 0 : index
    %c0_18 = arith.constant 0 : index
    %c0_19 = arith.constant 0 : index
    %c9 = arith.constant 9 : index
    %8 = vector.load %arg2[%c0_16, %c0_17, %c0_18, %c0_19, %c9] : memref<1x1x9x9x12xbf16, #tpu.memory_space<vmem>>, vector<1x1x8x8x3xbf16>
    %9 = vector.shape_cast %8 : vector<1x1x8x8x3xbf16> to vector<8x8x3xbf16>
    %c0_20 = arith.constant 0 : index
    %c0_21 = arith.constant 0 : index
    %c0_22 = arith.constant 0 : index
    %c1_23 = arith.constant 1 : index
    %c6_24 = arith.constant 6 : index
    %10 = vector.load %arg2[%c0_20, %c0_21, %c0_22, %c1_23, %c6_24] : memref<1x1x9x9x12xbf16, #tpu.memory_space<vmem>>, vector<1x1x8x8x3xbf16>
    %11 = vector.shape_cast %10 : vector<1x1x8x8x3xbf16> to vector<8x8x3xbf16>
    %c0_25 = arith.constant 0 : index
    %c0_26 = arith.constant 0 : index
    %c1_27 = arith.constant 1 : index
    %c0_28 = arith.constant 0 : index
    %c0_29 = arith.constant 0 : index
    %12 = vector.load %arg2[%c0_25, %c0_26, %c1_27, %c0_28, %c0_29] : memref<1x1x9x9x12xbf16, #tpu.memory_space<vmem>>, vector<1x1x8x8x3xbf16>
    %13 = vector.shape_cast %12 : vector<1x1x8x8x3xbf16> to vector<8x8x3xbf16>
    %c0_30 = arith.constant 0 : index
    %c0_31 = arith.constant 0 : index
    %c1_32 = arith.constant 1 : index
    %c0_33 = arith.constant 0 : index
    %c3_34 = arith.constant 3 : index
    %14 = vector.load %arg2[%c0_30, %c0_31, %c1_32, %c0_33, %c3_34] : memref<1x1x9x9x12xbf16, #tpu.memory_space<vmem>>, vector<1x1x8x8x3xbf16>
    %15 = vector.shape_cast %14 : vector<1x1x8x8x3xbf16> to vector<8x8x3xbf16>
    %c0_35 = arith.constant 0 : index
    %c0_36 = arith.constant 0 : index
    %c1_37 = arith.constant 1 : index
    %c1_38 = arith.constant 1 : index
    %c0_39 = arith.constant 0 : index
    %16 = vector.load %arg2[%c0_35, %c0_36, %c1_37, %c1_38, %c0_39] : memref<1x1x9x9x12xbf16, #tpu.memory_space<vmem>>, vector<1x1x8x8x3xbf16>
    %17 = vector.shape_cast %16 : vector<1x1x8x8x3xbf16> to vector<8x8x3xbf16>
    %18 = tpu.concatenate %1, %3, %5, %7, %9, %11, %13, %15, %17 in 2 : vector<8x8x3xbf16>, vector<8x8x3xbf16>, vector<8x8x3xbf16>, vector<8x8x3xbf16>, vector<8x8x3xbf16>, vector<8x8x3xbf16>, vector<8x8x3xbf16>, vector<8x8x3xbf16>, vector<8x8x3xbf16> -> vector<8x8x27xbf16>
    %19 = vector.shape_cast %18 : vector<8x8x27xbf16> to vector<64x27xbf16>
    %c0_40 = arith.constant 0 : index
    %c0_41 = arith.constant 0 : index
    %20 = vector.load %arg3[%c0_40, %c0_41] : memref<27x8xbf16, #tpu.memory_space<vmem>>, vector<27x8xbf16>
    %cst = arith.constant dense<0.000000e+00> : vector<64x8xf32>
    %21 = tpu.matmul %19, %20, %cst {dimension_numbers = #tpu.dot_dimension_numbers<[1], [0], [0], [1], [0, 0, 1, 1], [], []>} : vector<64x27xbf16>, vector<27x8xbf16>, vector<64x8xf32> -> vector<64x8xf32>
    %c0_42 = arith.constant 0 : index
    %c0_43 = arith.constant 0 : index
    %22 = vector.load %arg4[%c0_42, %c0_43] : memref<1x8xf32, #tpu.memory_space<vmem>>, vector<1x8xf32>
    %23 = vector.broadcast %22 : vector<1x8xf32> to vector<64x8xf32>
    %24 = arith.addf %21, %23 : vector<64x8xf32>
    %cst_44 = arith.constant 0.000000e+00 : f32
    %25 = vector.broadcast %cst_44 : f32 to vector<64x8xf32>
    %26 = arith.maximumf %24, %25 : vector<64x8xf32>
    %27 = vector.shape_cast %26 : vector<64x8xf32> to vector<8x8x8xf32>
    %28 = arith.truncf %27 : vector<8x8x8xf32> to vector<8x8x8xbf16>
    %c0_45 = arith.constant 0 : index
    %c0_46 = arith.constant 0 : index
    %c0_47 = arith.constant 0 : index
    %c0_48 = arith.constant 0 : index
    %29 = vector.load %arg5[%c0_45, %c0_46, %c0_47, %c0_48] : memref<1x8x8x8xbf16, #tpu.memory_space<vmem>>, vector<1x8x8x8xbf16>
    %30 = vector.shape_cast %29 : vector<1x8x8x8xbf16> to vector<8x8x8xbf16>
    %31 = vector.shape_cast %28 : vector<8x8x8xbf16> to vector<1x8x8x8xbf16>
    tpu.vector_store %arg5[%c0_45, %c0_46, %c0_47, %c0_48], %31 {strides = array<i32>} : memref<1x8x8x8xbf16, #tpu.memory_space<vmem>>, vector<1x8x8x8xbf16>,
    return
  }
  func.func @transform_0(%arg0: i32, %arg1: i32) -> (i32, i32, i32, i32, i32) {
    %c0_i32 = arith.constant 0 : i32
    %c0_i32_0 = arith.constant 0 : i32
    %c0_i32_1 = arith.constant 0 : i32
    %c0_i32_2 = arith.constant 0 : i32
    return %arg0, %arg1, %c0_i32, %c0_i32_0, %c0_i32_1 : i32, i32, i32, i32, i32
  }
  func.func @transform_1(%arg0: i32, %arg1: i32) -> (i32, i32) {
    %c0_i32 = arith.constant 0 : i32
    %c0_i32_0 = arith.constant 0 : i32
    %c0_i32_1 = arith.constant 0 : i32
    return %c0_i32, %c0_i32_0 : i32, i32
  }
  func.func @transform_2(%arg0: i32, %arg1: i32) -> (i32, i32) {
    %c0_i32 = arith.constant 0 : i32
    %c0_i32_0 = arith.constant 0 : i32
    %c0_i32_1 = arith.constant 0 : i32
    return %c0_i32, %c0_i32_0 : i32, i32
  }
  func.func @transform_3(%arg0: i32, %arg1: i32) -> (i32, i32, i32, i32) {
    %c0_i32 = arith.constant 0 : i32
    %c0_i32_0 = arith.constant 0 : i32
    %c0_i32_1 = arith.constant 0 : i32
    return %arg0, %arg1, %c0_i32, %c0_i32_0 : i32, i32, i32, i32
  }
}

module attributes {stable_mosaic.version = 11 : i64} {
  func.func @_conv3x3_s2_kernel(%arg0: i32, %arg1: i32, %arg2: memref<1x1x5x5x32xbf16, #tpu.memory_space<vmem>>, %arg3: memref<72x16xbf16, #tpu.memory_space<vmem>>, %arg4: memref<1x16xf32, #tpu.memory_space<vmem>>, %arg5: memref<1x4x4x16xbf16, #tpu.memory_space<vmem>>) attributes {dimension_semantics = [#tpu.dimension_semantics<parallel>, #tpu.dimension_semantics<parallel>], iteration_bounds = array<i64: 2, 1>, scalar_prefetch = 0 : i64, scratch_operands = 0 : i64, tpu.core_type = #tpu.core_type<tc>, window_params = [{transform_indices = @transform_0, window_bounds = array<i64: 1, 1, 5, 5, 32>}, {pipeline_mode = #tpu.pipeline_mode<synchronous>, transform_indices = @transform_1, window_bounds = array<i64: 72, 16>}, {pipeline_mode = #tpu.pipeline_mode<synchronous>, transform_indices = @transform_2, window_bounds = array<i64: 1, 16>}, {transform_indices = @transform_3, window_bounds = array<i64: 1, 4, 4, 16>}]} {
    %c0 = arith.constant 0 : index
    %c0_0 = arith.constant 0 : index
    %c0_1 = arith.constant 0 : index
    %c0_2 = arith.constant 0 : index
    %c0_3 = arith.constant 0 : index
    %0 = vector.load %arg2[%c0, %c0_0, %c0_1, %c0_2, %c0_3] : memref<1x1x5x5x32xbf16, #tpu.memory_space<vmem>>, vector<1x1x4x4x8xbf16>
    %1 = vector.shape_cast %0 : vector<1x1x4x4x8xbf16> to vector<4x4x8xbf16>
    %c0_4 = arith.constant 0 : index
    %c0_5 = arith.constant 0 : index
    %c0_6 = arith.constant 0 : index
    %c0_7 = arith.constant 0 : index
    %c8 = arith.constant 8 : index
    %2 = vector.load %arg2[%c0_4, %c0_5, %c0_6, %c0_7, %c8] : memref<1x1x5x5x32xbf16, #tpu.memory_space<vmem>>, vector<1x1x4x4x8xbf16>
    %3 = vector.shape_cast %2 : vector<1x1x4x4x8xbf16> to vector<4x4x8xbf16>
    %c0_8 = arith.constant 0 : index
    %c0_9 = arith.constant 0 : index
    %c0_10 = arith.constant 0 : index
    %c1 = arith.constant 1 : index
    %c0_11 = arith.constant 0 : index
    %4 = vector.load %arg2[%c0_8, %c0_9, %c0_10, %c1, %c0_11] : memref<1x1x5x5x32xbf16, #tpu.memory_space<vmem>>, vector<1x1x4x4x8xbf16>
    %5 = vector.shape_cast %4 : vector<1x1x4x4x8xbf16> to vector<4x4x8xbf16>
    %c0_12 = arith.constant 0 : index
    %c0_13 = arith.constant 0 : index
    %c0_14 = arith.constant 0 : index
    %c0_15 = arith.constant 0 : index
    %c16 = arith.constant 16 : index
    %6 = vector.load %arg2[%c0_12, %c0_13, %c0_14, %c0_15, %c16] : memref<1x1x5x5x32xbf16, #tpu.memory_space<vmem>>, vector<1x1x4x4x8xbf16>
    %7 = vector.shape_cast %6 : vector<1x1x4x4x8xbf16> to vector<4x4x8xbf16>
    %c0_16 = arith.constant 0 : index
    %c0_17 = arith.constant 0 : index
    %c0_18 = arith.constant 0 : index
    %c0_19 = arith.constant 0 : index
    %c24 = arith.constant 24 : index
    %8 = vector.load %arg2[%c0_16, %c0_17, %c0_18, %c0_19, %c24] : memref<1x1x5x5x32xbf16, #tpu.memory_space<vmem>>, vector<1x1x4x4x8xbf16>
    %9 = vector.shape_cast %8 : vector<1x1x4x4x8xbf16> to vector<4x4x8xbf16>
    %c0_20 = arith.constant 0 : index
    %c0_21 = arith.constant 0 : index
    %c0_22 = arith.constant 0 : index
    %c1_23 = arith.constant 1 : index
    %c16_24 = arith.constant 16 : index
    %10 = vector.load %arg2[%c0_20, %c0_21, %c0_22, %c1_23, %c16_24] : memref<1x1x5x5x32xbf16, #tpu.memory_space<vmem>>, vector<1x1x4x4x8xbf16>
    %11 = vector.shape_cast %10 : vector<1x1x4x4x8xbf16> to vector<4x4x8xbf16>
    %c0_25 = arith.constant 0 : index
    %c0_26 = arith.constant 0 : index
    %c1_27 = arith.constant 1 : index
    %c0_28 = arith.constant 0 : index
    %c0_29 = arith.constant 0 : index
    %12 = vector.load %arg2[%c0_25, %c0_26, %c1_27, %c0_28, %c0_29] : memref<1x1x5x5x32xbf16, #tpu.memory_space<vmem>>, vector<1x1x4x4x8xbf16>
    %13 = vector.shape_cast %12 : vector<1x1x4x4x8xbf16> to vector<4x4x8xbf16>
    %c0_30 = arith.constant 0 : index
    %c0_31 = arith.constant 0 : index
    %c1_32 = arith.constant 1 : index
    %c0_33 = arith.constant 0 : index
    %c8_34 = arith.constant 8 : index
    %14 = vector.load %arg2[%c0_30, %c0_31, %c1_32, %c0_33, %c8_34] : memref<1x1x5x5x32xbf16, #tpu.memory_space<vmem>>, vector<1x1x4x4x8xbf16>
    %15 = vector.shape_cast %14 : vector<1x1x4x4x8xbf16> to vector<4x4x8xbf16>
    %c0_35 = arith.constant 0 : index
    %c0_36 = arith.constant 0 : index
    %c1_37 = arith.constant 1 : index
    %c1_38 = arith.constant 1 : index
    %c0_39 = arith.constant 0 : index
    %16 = vector.load %arg2[%c0_35, %c0_36, %c1_37, %c1_38, %c0_39] : memref<1x1x5x5x32xbf16, #tpu.memory_space<vmem>>, vector<1x1x4x4x8xbf16>
    %17 = vector.shape_cast %16 : vector<1x1x4x4x8xbf16> to vector<4x4x8xbf16>
    %18 = tpu.concatenate %1, %3, %5, %7, %9, %11, %13, %15, %17 in 2 : vector<4x4x8xbf16>, vector<4x4x8xbf16>, vector<4x4x8xbf16>, vector<4x4x8xbf16>, vector<4x4x8xbf16>, vector<4x4x8xbf16>, vector<4x4x8xbf16>, vector<4x4x8xbf16>, vector<4x4x8xbf16> -> vector<4x4x72xbf16>
    %19 = vector.shape_cast %18 : vector<4x4x72xbf16> to vector<16x72xbf16>
    %c0_40 = arith.constant 0 : index
    %c0_41 = arith.constant 0 : index
    %20 = vector.load %arg3[%c0_40, %c0_41] : memref<72x16xbf16, #tpu.memory_space<vmem>>, vector<72x16xbf16>
    %cst = arith.constant dense<0.000000e+00> : vector<16x16xf32>
    %21 = tpu.matmul %19, %20, %cst {dimension_numbers = #tpu.dot_dimension_numbers<[1], [0], [0], [1], [0, 0, 1, 1], [], []>} : vector<16x72xbf16>, vector<72x16xbf16>, vector<16x16xf32> -> vector<16x16xf32>
    %c0_42 = arith.constant 0 : index
    %c0_43 = arith.constant 0 : index
    %22 = vector.load %arg4[%c0_42, %c0_43] : memref<1x16xf32, #tpu.memory_space<vmem>>, vector<1x16xf32>
    %23 = vector.broadcast %22 : vector<1x16xf32> to vector<16x16xf32>
    %24 = arith.addf %21, %23 : vector<16x16xf32>
    %cst_44 = arith.constant 0.000000e+00 : f32
    %25 = vector.broadcast %cst_44 : f32 to vector<16x16xf32>
    %26 = arith.maximumf %24, %25 : vector<16x16xf32>
    %27 = vector.shape_cast %26 : vector<16x16xf32> to vector<4x4x16xf32>
    %28 = arith.truncf %27 : vector<4x4x16xf32> to vector<4x4x16xbf16>
    %c0_45 = arith.constant 0 : index
    %c0_46 = arith.constant 0 : index
    %c0_47 = arith.constant 0 : index
    %c0_48 = arith.constant 0 : index
    %29 = vector.load %arg5[%c0_45, %c0_46, %c0_47, %c0_48] : memref<1x4x4x16xbf16, #tpu.memory_space<vmem>>, vector<1x4x4x16xbf16>
    %30 = vector.shape_cast %29 : vector<1x4x4x16xbf16> to vector<4x4x16xbf16>
    %31 = vector.shape_cast %28 : vector<4x4x16xbf16> to vector<1x4x4x16xbf16>
    tpu.vector_store %arg5[%c0_45, %c0_46, %c0_47, %c0_48], %31 {strides = array<i32>} : memref<1x4x4x16xbf16, #tpu.memory_space<vmem>>, vector<1x4x4x16xbf16>,
    return
  }
  func.func @transform_0(%arg0: i32, %arg1: i32) -> (i32, i32, i32, i32, i32) {
    %c0_i32 = arith.constant 0 : i32
    %c0_i32_0 = arith.constant 0 : i32
    %c0_i32_1 = arith.constant 0 : i32
    %c0_i32_2 = arith.constant 0 : i32
    return %arg0, %arg1, %c0_i32, %c0_i32_0, %c0_i32_1 : i32, i32, i32, i32, i32
  }
  func.func @transform_1(%arg0: i32, %arg1: i32) -> (i32, i32) {
    %c0_i32 = arith.constant 0 : i32
    %c0_i32_0 = arith.constant 0 : i32
    %c0_i32_1 = arith.constant 0 : i32
    return %c0_i32, %c0_i32_0 : i32, i32
  }
  func.func @transform_2(%arg0: i32, %arg1: i32) -> (i32, i32) {
    %c0_i32 = arith.constant 0 : i32
    %c0_i32_0 = arith.constant 0 : i32
    %c0_i32_1 = arith.constant 0 : i32
    return %c0_i32, %c0_i32_0 : i32, i32
  }
  func.func @transform_3(%arg0: i32, %arg1: i32) -> (i32, i32, i32, i32) {
    %c0_i32 = arith.constant 0 : i32
    %c0_i32_0 = arith.constant 0 : i32
    %c0_i32_1 = arith.constant 0 : i32
    return %arg0, %arg1, %c0_i32, %c0_i32_0 : i32, i32, i32, i32
  }
}

module attributes {stable_mosaic.version = 11 : i64} {
  func.func @_conv3x3_s2_kernel(%arg0: i32, %arg1: i32, %arg2: memref<1x1x3x3x64xbf16, #tpu.memory_space<vmem>>, %arg3: memref<144x32xbf16, #tpu.memory_space<vmem>>, %arg4: memref<1x32xf32, #tpu.memory_space<vmem>>, %arg5: memref<1x2x2x32xbf16, #tpu.memory_space<vmem>>) attributes {dimension_semantics = [#tpu.dimension_semantics<parallel>, #tpu.dimension_semantics<parallel>], iteration_bounds = array<i64: 2, 1>, scalar_prefetch = 0 : i64, scratch_operands = 0 : i64, tpu.core_type = #tpu.core_type<tc>, window_params = [{transform_indices = @transform_0, window_bounds = array<i64: 1, 1, 3, 3, 64>}, {pipeline_mode = #tpu.pipeline_mode<synchronous>, transform_indices = @transform_1, window_bounds = array<i64: 144, 32>}, {pipeline_mode = #tpu.pipeline_mode<synchronous>, transform_indices = @transform_2, window_bounds = array<i64: 1, 32>}, {transform_indices = @transform_3, window_bounds = array<i64: 1, 2, 2, 32>}]} {
    %c0 = arith.constant 0 : index
    %c0_0 = arith.constant 0 : index
    %c0_1 = arith.constant 0 : index
    %c0_2 = arith.constant 0 : index
    %c0_3 = arith.constant 0 : index
    %0 = vector.load %arg2[%c0, %c0_0, %c0_1, %c0_2, %c0_3] : memref<1x1x3x3x64xbf16, #tpu.memory_space<vmem>>, vector<1x1x2x2x16xbf16>
    %1 = vector.shape_cast %0 : vector<1x1x2x2x16xbf16> to vector<2x2x16xbf16>
    %c0_4 = arith.constant 0 : index
    %c0_5 = arith.constant 0 : index
    %c0_6 = arith.constant 0 : index
    %c0_7 = arith.constant 0 : index
    %c16 = arith.constant 16 : index
    %2 = vector.load %arg2[%c0_4, %c0_5, %c0_6, %c0_7, %c16] : memref<1x1x3x3x64xbf16, #tpu.memory_space<vmem>>, vector<1x1x2x2x16xbf16>
    %3 = vector.shape_cast %2 : vector<1x1x2x2x16xbf16> to vector<2x2x16xbf16>
    %c0_8 = arith.constant 0 : index
    %c0_9 = arith.constant 0 : index
    %c0_10 = arith.constant 0 : index
    %c1 = arith.constant 1 : index
    %c0_11 = arith.constant 0 : index
    %4 = vector.load %arg2[%c0_8, %c0_9, %c0_10, %c1, %c0_11] : memref<1x1x3x3x64xbf16, #tpu.memory_space<vmem>>, vector<1x1x2x2x16xbf16>
    %5 = vector.shape_cast %4 : vector<1x1x2x2x16xbf16> to vector<2x2x16xbf16>
    %c0_12 = arith.constant 0 : index
    %c0_13 = arith.constant 0 : index
    %c0_14 = arith.constant 0 : index
    %c0_15 = arith.constant 0 : index
    %c32 = arith.constant 32 : index
    %6 = vector.load %arg2[%c0_12, %c0_13, %c0_14, %c0_15, %c32] : memref<1x1x3x3x64xbf16, #tpu.memory_space<vmem>>, vector<1x1x2x2x16xbf16>
    %7 = vector.shape_cast %6 : vector<1x1x2x2x16xbf16> to vector<2x2x16xbf16>
    %c0_16 = arith.constant 0 : index
    %c0_17 = arith.constant 0 : index
    %c0_18 = arith.constant 0 : index
    %c0_19 = arith.constant 0 : index
    %c48 = arith.constant 48 : index
    %8 = vector.load %arg2[%c0_16, %c0_17, %c0_18, %c0_19, %c48] : memref<1x1x3x3x64xbf16, #tpu.memory_space<vmem>>, vector<1x1x2x2x16xbf16>
    %9 = vector.shape_cast %8 : vector<1x1x2x2x16xbf16> to vector<2x2x16xbf16>
    %c0_20 = arith.constant 0 : index
    %c0_21 = arith.constant 0 : index
    %c0_22 = arith.constant 0 : index
    %c1_23 = arith.constant 1 : index
    %c32_24 = arith.constant 32 : index
    %10 = vector.load %arg2[%c0_20, %c0_21, %c0_22, %c1_23, %c32_24] : memref<1x1x3x3x64xbf16, #tpu.memory_space<vmem>>, vector<1x1x2x2x16xbf16>
    %11 = vector.shape_cast %10 : vector<1x1x2x2x16xbf16> to vector<2x2x16xbf16>
    %c0_25 = arith.constant 0 : index
    %c0_26 = arith.constant 0 : index
    %c1_27 = arith.constant 1 : index
    %c0_28 = arith.constant 0 : index
    %c0_29 = arith.constant 0 : index
    %12 = vector.load %arg2[%c0_25, %c0_26, %c1_27, %c0_28, %c0_29] : memref<1x1x3x3x64xbf16, #tpu.memory_space<vmem>>, vector<1x1x2x2x16xbf16>
    %13 = vector.shape_cast %12 : vector<1x1x2x2x16xbf16> to vector<2x2x16xbf16>
    %c0_30 = arith.constant 0 : index
    %c0_31 = arith.constant 0 : index
    %c1_32 = arith.constant 1 : index
    %c0_33 = arith.constant 0 : index
    %c16_34 = arith.constant 16 : index
    %14 = vector.load %arg2[%c0_30, %c0_31, %c1_32, %c0_33, %c16_34] : memref<1x1x3x3x64xbf16, #tpu.memory_space<vmem>>, vector<1x1x2x2x16xbf16>
    %15 = vector.shape_cast %14 : vector<1x1x2x2x16xbf16> to vector<2x2x16xbf16>
    %c0_35 = arith.constant 0 : index
    %c0_36 = arith.constant 0 : index
    %c1_37 = arith.constant 1 : index
    %c1_38 = arith.constant 1 : index
    %c0_39 = arith.constant 0 : index
    %16 = vector.load %arg2[%c0_35, %c0_36, %c1_37, %c1_38, %c0_39] : memref<1x1x3x3x64xbf16, #tpu.memory_space<vmem>>, vector<1x1x2x2x16xbf16>
    %17 = vector.shape_cast %16 : vector<1x1x2x2x16xbf16> to vector<2x2x16xbf16>
    %18 = tpu.concatenate %1, %3, %5, %7, %9, %11, %13, %15, %17 in 2 : vector<2x2x16xbf16>, vector<2x2x16xbf16>, vector<2x2x16xbf16>, vector<2x2x16xbf16>, vector<2x2x16xbf16>, vector<2x2x16xbf16>, vector<2x2x16xbf16>, vector<2x2x16xbf16>, vector<2x2x16xbf16> -> vector<2x2x144xbf16>
    %19 = vector.shape_cast %18 : vector<2x2x144xbf16> to vector<4x144xbf16>
    %c0_40 = arith.constant 0 : index
    %c0_41 = arith.constant 0 : index
    %20 = vector.load %arg3[%c0_40, %c0_41] : memref<144x32xbf16, #tpu.memory_space<vmem>>, vector<144x32xbf16>
    %cst = arith.constant dense<0.000000e+00> : vector<4x32xf32>
    %21 = tpu.matmul %19, %20, %cst {dimension_numbers = #tpu.dot_dimension_numbers<[1], [0], [0], [1], [0, 0, 1, 1], [], []>} : vector<4x144xbf16>, vector<144x32xbf16>, vector<4x32xf32> -> vector<4x32xf32>
    %c0_42 = arith.constant 0 : index
    %c0_43 = arith.constant 0 : index
    %22 = vector.load %arg4[%c0_42, %c0_43] : memref<1x32xf32, #tpu.memory_space<vmem>>, vector<1x32xf32>
    %23 = vector.broadcast %22 : vector<1x32xf32> to vector<4x32xf32>
    %24 = arith.addf %21, %23 : vector<4x32xf32>
    %cst_44 = arith.constant 0.000000e+00 : f32
    %25 = vector.broadcast %cst_44 : f32 to vector<4x32xf32>
    %26 = arith.maximumf %24, %25 : vector<4x32xf32>
    %27 = vector.shape_cast %26 : vector<4x32xf32> to vector<2x2x32xf32>
    %28 = arith.truncf %27 : vector<2x2x32xf32> to vector<2x2x32xbf16>
    %c0_45 = arith.constant 0 : index
    %c0_46 = arith.constant 0 : index
    %c0_47 = arith.constant 0 : index
    %c0_48 = arith.constant 0 : index
    %29 = vector.load %arg5[%c0_45, %c0_46, %c0_47, %c0_48] : memref<1x2x2x32xbf16, #tpu.memory_space<vmem>>, vector<1x2x2x32xbf16>
    %30 = vector.shape_cast %29 : vector<1x2x2x32xbf16> to vector<2x2x32xbf16>
    %31 = vector.shape_cast %28 : vector<2x2x32xbf16> to vector<1x2x2x32xbf16>
    tpu.vector_store %arg5[%c0_45, %c0_46, %c0_47, %c0_48], %31 {strides = array<i32>} : memref<1x2x2x32xbf16, #tpu.memory_space<vmem>>, vector<1x2x2x32xbf16>,
    return
  }
  func.func @transform_0(%arg0: i32, %arg1: i32) -> (i32, i32, i32, i32, i32) {
    %c0_i32 = arith.constant 0 : i32
    %c0_i32_0 = arith.constant 0 : i32
    %c0_i32_1 = arith.constant 0 : i32
    %c0_i32_2 = arith.constant 0 : i32
    return %arg0, %arg1, %c0_i32, %c0_i32_0, %c0_i32_1 : i32, i32, i32, i32, i32
  }
  func.func @transform_1(%arg0: i32, %arg1: i32) -> (i32, i32) {
    %c0_i32 = arith.constant 0 : i32
    %c0_i32_0 = arith.constant 0 : i32
    %c0_i32_1 = arith.constant 0 : i32
    return %c0_i32, %c0_i32_0 : i32, i32
  }
  func.func @transform_2(%arg0: i32, %arg1: i32) -> (i32, i32) {
    %c0_i32 = arith.constant 0 : i32
    %c0_i32_0 = arith.constant 0 : i32
    %c0_i32_1 = arith.constant 0 : i32
    return %c0_i32, %c0_i32_0 : i32, i32
  }
  func.func @transform_3(%arg0: i32, %arg1: i32) -> (i32, i32, i32, i32) {
    %c0_i32 = arith.constant 0 : i32
    %c0_i32_0 = arith.constant 0 : i32
    %c0_i32_1 = arith.constant 0 : i32
    return %arg0, %arg1, %c0_i32, %c0_i32_0 : i32, i32, i32, i32
  }
}

module attributes {stable_mosaic.version = 11 : i64} {
  func.func @_conv3x3_s2_kernel(%arg0: i32, %arg1: i32, %arg2: memref<1x1x2x2x128xbf16, #tpu.memory_space<vmem>>, %arg3: memref<288x32xbf16, #tpu.memory_space<vmem>>, %arg4: memref<1x32xf32, #tpu.memory_space<vmem>>, %arg5: memref<1x1x1x32xbf16, #tpu.memory_space<vmem>>) attributes {dimension_semantics = [#tpu.dimension_semantics<parallel>, #tpu.dimension_semantics<parallel>], iteration_bounds = array<i64: 2, 1>, scalar_prefetch = 0 : i64, scratch_operands = 0 : i64, tpu.core_type = #tpu.core_type<tc>, window_params = [{transform_indices = @transform_0, window_bounds = array<i64: 1, 1, 2, 2, 128>}, {pipeline_mode = #tpu.pipeline_mode<synchronous>, transform_indices = @transform_1, window_bounds = array<i64: 288, 32>}, {pipeline_mode = #tpu.pipeline_mode<synchronous>, transform_indices = @transform_2, window_bounds = array<i64: 1, 32>}, {transform_indices = @transform_3, window_bounds = array<i64: 1, 1, 1, 32>}]} {
    %c0 = arith.constant 0 : index
    %c0_0 = arith.constant 0 : index
    %c0_1 = arith.constant 0 : index
    %c0_2 = arith.constant 0 : index
    %c0_3 = arith.constant 0 : index
    %0 = vector.load %arg2[%c0, %c0_0, %c0_1, %c0_2, %c0_3] : memref<1x1x2x2x128xbf16, #tpu.memory_space<vmem>>, vector<1x1x1x1x32xbf16>
    %1 = vector.shape_cast %0 : vector<1x1x1x1x32xbf16> to vector<1x1x32xbf16>
    %c0_4 = arith.constant 0 : index
    %c0_5 = arith.constant 0 : index
    %c0_6 = arith.constant 0 : index
    %c0_7 = arith.constant 0 : index
    %c32 = arith.constant 32 : index
    %2 = vector.load %arg2[%c0_4, %c0_5, %c0_6, %c0_7, %c32] : memref<1x1x2x2x128xbf16, #tpu.memory_space<vmem>>, vector<1x1x1x1x32xbf16>
    %3 = vector.shape_cast %2 : vector<1x1x1x1x32xbf16> to vector<1x1x32xbf16>
    %c0_8 = arith.constant 0 : index
    %c0_9 = arith.constant 0 : index
    %c0_10 = arith.constant 0 : index
    %c1 = arith.constant 1 : index
    %c0_11 = arith.constant 0 : index
    %4 = vector.load %arg2[%c0_8, %c0_9, %c0_10, %c1, %c0_11] : memref<1x1x2x2x128xbf16, #tpu.memory_space<vmem>>, vector<1x1x1x1x32xbf16>
    %5 = vector.shape_cast %4 : vector<1x1x1x1x32xbf16> to vector<1x1x32xbf16>
    %c0_12 = arith.constant 0 : index
    %c0_13 = arith.constant 0 : index
    %c0_14 = arith.constant 0 : index
    %c0_15 = arith.constant 0 : index
    %c64 = arith.constant 64 : index
    %6 = vector.load %arg2[%c0_12, %c0_13, %c0_14, %c0_15, %c64] : memref<1x1x2x2x128xbf16, #tpu.memory_space<vmem>>, vector<1x1x1x1x32xbf16>
    %7 = vector.shape_cast %6 : vector<1x1x1x1x32xbf16> to vector<1x1x32xbf16>
    %c0_16 = arith.constant 0 : index
    %c0_17 = arith.constant 0 : index
    %c0_18 = arith.constant 0 : index
    %c0_19 = arith.constant 0 : index
    %c96 = arith.constant 96 : index
    %8 = vector.load %arg2[%c0_16, %c0_17, %c0_18, %c0_19, %c96] : memref<1x1x2x2x128xbf16, #tpu.memory_space<vmem>>, vector<1x1x1x1x32xbf16>
    %9 = vector.shape_cast %8 : vector<1x1x1x1x32xbf16> to vector<1x1x32xbf16>
    %c0_20 = arith.constant 0 : index
    %c0_21 = arith.constant 0 : index
    %c0_22 = arith.constant 0 : index
    %c1_23 = arith.constant 1 : index
    %c64_24 = arith.constant 64 : index
    %10 = vector.load %arg2[%c0_20, %c0_21, %c0_22, %c1_23, %c64_24] : memref<1x1x2x2x128xbf16, #tpu.memory_space<vmem>>, vector<1x1x1x1x32xbf16>
    %11 = vector.shape_cast %10 : vector<1x1x1x1x32xbf16> to vector<1x1x32xbf16>
    %c0_25 = arith.constant 0 : index
    %c0_26 = arith.constant 0 : index
    %c1_27 = arith.constant 1 : index
    %c0_28 = arith.constant 0 : index
    %c0_29 = arith.constant 0 : index
    %12 = vector.load %arg2[%c0_25, %c0_26, %c1_27, %c0_28, %c0_29] : memref<1x1x2x2x128xbf16, #tpu.memory_space<vmem>>, vector<1x1x1x1x32xbf16>
    %13 = vector.shape_cast %12 : vector<1x1x1x1x32xbf16> to vector<1x1x32xbf16>
    %c0_30 = arith.constant 0 : index
    %c0_31 = arith.constant 0 : index
    %c1_32 = arith.constant 1 : index
    %c0_33 = arith.constant 0 : index
    %c32_34 = arith.constant 32 : index
    %14 = vector.load %arg2[%c0_30, %c0_31, %c1_32, %c0_33, %c32_34] : memref<1x1x2x2x128xbf16, #tpu.memory_space<vmem>>, vector<1x1x1x1x32xbf16>
    %15 = vector.shape_cast %14 : vector<1x1x1x1x32xbf16> to vector<1x1x32xbf16>
    %c0_35 = arith.constant 0 : index
    %c0_36 = arith.constant 0 : index
    %c1_37 = arith.constant 1 : index
    %c1_38 = arith.constant 1 : index
    %c0_39 = arith.constant 0 : index
    %16 = vector.load %arg2[%c0_35, %c0_36, %c1_37, %c1_38, %c0_39] : memref<1x1x2x2x128xbf16, #tpu.memory_space<vmem>>, vector<1x1x1x1x32xbf16>
    %17 = vector.shape_cast %16 : vector<1x1x1x1x32xbf16> to vector<1x1x32xbf16>
    %18 = tpu.concatenate %1, %3, %5, %7, %9, %11, %13, %15, %17 in 2 : vector<1x1x32xbf16>, vector<1x1x32xbf16>, vector<1x1x32xbf16>, vector<1x1x32xbf16>, vector<1x1x32xbf16>, vector<1x1x32xbf16>, vector<1x1x32xbf16>, vector<1x1x32xbf16>, vector<1x1x32xbf16> -> vector<1x1x288xbf16>
    %19 = vector.shape_cast %18 : vector<1x1x288xbf16> to vector<1x288xbf16>
    %c0_40 = arith.constant 0 : index
    %c0_41 = arith.constant 0 : index
    %20 = vector.load %arg3[%c0_40, %c0_41] : memref<288x32xbf16, #tpu.memory_space<vmem>>, vector<288x32xbf16>
    %cst = arith.constant dense<0.000000e+00> : vector<1x32xf32>
    %21 = tpu.matmul %19, %20, %cst {dimension_numbers = #tpu.dot_dimension_numbers<[1], [0], [0], [1], [0, 0, 1, 1], [], []>} : vector<1x288xbf16>, vector<288x32xbf16>, vector<1x32xf32> -> vector<1x32xf32>
    %c0_42 = arith.constant 0 : index
    %c0_43 = arith.constant 0 : index
    %22 = vector.load %arg4[%c0_42, %c0_43] : memref<1x32xf32, #tpu.memory_space<vmem>>, vector<1x32xf32>
    %23 = arith.addf %21, %22 : vector<1x32xf32>
    %cst_44 = arith.constant 0.000000e+00 : f32
    %24 = vector.broadcast %cst_44 : f32 to vector<1x32xf32>
    %25 = arith.maximumf %23, %24 : vector<1x32xf32>
    %26 = vector.shape_cast %25 : vector<1x32xf32> to vector<1x1x32xf32>
    %27 = arith.truncf %26 : vector<1x1x32xf32> to vector<1x1x32xbf16>
    %c0_45 = arith.constant 0 : index
    %c0_46 = arith.constant 0 : index
    %c0_47 = arith.constant 0 : index
    %c0_48 = arith.constant 0 : index
    %28 = vector.load %arg5[%c0_45, %c0_46, %c0_47, %c0_48] : memref<1x1x1x32xbf16, #tpu.memory_space<vmem>>, vector<1x1x1x32xbf16>
    %29 = vector.shape_cast %28 : vector<1x1x1x32xbf16> to vector<1x1x32xbf16>
    %30 = vector.shape_cast %27 : vector<1x1x32xbf16> to vector<1x1x1x32xbf16>
    tpu.vector_store %arg5[%c0_45, %c0_46, %c0_47, %c0_48], %30 {strides = array<i32>} : memref<1x1x1x32xbf16, #tpu.memory_space<vmem>>, vector<1x1x1x32xbf16>,
    return
  }
  func.func @transform_0(%arg0: i32, %arg1: i32) -> (i32, i32, i32, i32, i32) {
    %c0_i32 = arith.constant 0 : i32
    %c0_i32_0 = arith.constant 0 : i32
    %c0_i32_1 = arith.constant 0 : i32
    %c0_i32_2 = arith.constant 0 : i32
    return %arg0, %arg1, %c0_i32, %c0_i32_0, %c0_i32_1 : i32, i32, i32, i32, i32
  }
  func.func @transform_1(%arg0: i32, %arg1: i32) -> (i32, i32) {
    %c0_i32 = arith.constant 0 : i32
    %c0_i32_0 = arith.constant 0 : i32
    %c0_i32_1 = arith.constant 0 : i32
    return %c0_i32, %c0_i32_0 : i32, i32
  }
  func.func @transform_2(%arg0: i32, %arg1: i32) -> (i32, i32) {
    %c0_i32 = arith.constant 0 : i32
    %c0_i32_0 = arith.constant 0 : i32
    %c0_i32_1 = arith.constant 0 : i32
    return %c0_i32, %c0_i32_0 : i32, i32
  }
  func.func @transform_3(%arg0: i32, %arg1: i32) -> (i32, i32, i32, i32) {
    %c0_i32 = arith.constant 0 : i32
    %c0_i32_0 = arith.constant 0 : i32
    %c0_i32_1 = arith.constant 0 : i32
    return %arg0, %arg1, %c0_i32, %c0_i32_0 : i32, i32, i32, i32
  }
}

</mosaic_0001>

<llo_original>
// kernel: backbone_base_forward.4
$region0: #{backbone_base_forward.4}
  #allocation0 [shape = 'u32[]', space=smem, size = 0x4, offset = 0x4, fixed_abs, tag = 'smem constant byte address 0x4 - core index']
  #allocation1 [shape = 'u32[144,128]{1,0:T(1,128)}', space=vmem, size = 0x12000, scoped, tag = 'internal scratch']
  %s0 = inlined_call_operand.vmem [shape: bf16[2,1,9,9,12], index: 0, kind: input, shape index: {}]
  %s1 = inlined_call_operand.vmem [shape: bf16[27,8], index: 1, kind: input, shape index: {}]
  %s2 = inlined_call_operand.vmem [shape: f32[1,8], index: 2, kind: input, shape index: {}]
  %s3 = inlined_call_operand.vmem [shape: bf16[2,8,8,8], index: 3, kind: output, shape index: {}]
  %s4 = sld [smem:[#allocation0]]
  $region45: #{backbone_base_forward.4} parent=0
    _
  %s6 = ssub.s32 1, %s4
  %s7 = scalar_select 0, %s6, %s4
  loop: start=0, step=1, limit=4
  $region2: #{backbone_base_forward.4} parent=0 // loop_pre_header
    _
  $region3: #{backbone_base_forward.4} parent=0 // loop_header
    %s9 = sphi 0, %s13
    %p10 = scmp.ge.s32.totalorder %s9, 4
    %s16 = sphi 0, %s28
    %s17 = sphi 0, %s24
    %s18 = sphi 0, %s16
    %s19 = sphi 0, %s17
    %s20 = sphi 0, %s18
    %s21 = sphi 0, %s19
    %s33 = sphi 0, %s35
    %s36 = sphi 0, %s33
    %s37 = sphi 0, %s36
    %s53 = sphi 0, %s37
    %s57 = sphi 0, %s57
    %s59 = sphi 0, %s57
    %s60 = sphi 0, %s59
    %s74 = sphi 0, %s60
    %s78 = sphi 0, %s78
    %s80 = sphi 0, %s78
    %s81 = sphi 0, %s80
    %s95 = sphi 0, %s81
    %s103 = sphi 0, %s105
    %s106 = sphi 0, %s103
    %s107 = sphi 0, %s106
    %s123 = sphi 0, %s107
  $region4: #{backbone_base_forward.4} parent=0 // loop_header_branch
    %12 = sbr.rel (%p10) target = $region8
  $region5: #{backbone_base_forward.4} parent=0 // loop_body
    %s14 = ssub.s32 %s9, 1
    %s15 = ssub.s32 %s9, 2
    %s22 = sadd.s32 1, %s17
    %p23 = scmp.ge.s32.totalorder %s22, 1
    %s24 = scalar_select %p23, 0, %s22
    %s25 = sadd.s32 1, %s16
    %s26 = scalar_select %p23, %s25, %s16
    %p27 = scmp.ge.s32.totalorder %s26, 2
    %s28 = scalar_select %p27, 0, %s26
    %s29 = ssub.s32 %s16, %s28
    %s30 = ssub.s32 %s17, %s24
    %s31 = sor.u32 %s29, %s30
    %p32 = scmp.eq.s32.totalorder %s31, 0
    %s34 = sadd.s32 %s33, 1
    %s35 = scalar_select %p32, %s33, %s34
    %p38 = pneg %p32
    %p39 = scmp.eq.s32.totalorder %s9, 1
    %p40 = por %p38, %p39
    %p41 = scmp.ne.s32.totalorder %s33, %s36
    %p42 = scmp.eq.s32.totalorder %s9, 0
    %p43 = por %p41, %p42
    %p44 = scmp.ne.s32.totalorder %s33, %s36
    %p45 = scmp.eq.s32.totalorder %s14, 1
    %p46 = por %p44, %p45
    %p47 = scmp.ne.s32.totalorder %s36, %s37
    %p48 = scmp.eq.s32.totalorder %s14, 0
    %p49 = por %p47, %p48
    %p50 = scmp.ne.s32.totalorder %s36, %s37
    %p51 = scmp.eq.s32.totalorder %s15, 1
    %p52 = por %p50, %p51
    %p54 = scmp.ne.s32.totalorder %s37, %s53
    %p55 = scmp.eq.s32.totalorder %s15, 0
    %p56 = por %p54, %p55
    %s58 = sadd.s32 %s57, 1
    %p61 = scmp.eq.s32.totalorder %s9, 1
    %p62 = scmp.ne.s32.totalorder %s57, %s59
    %p63 = scmp.eq.s32.totalorder %s9, 0
    %p64 = por %p62, %p63
    %p65 = scmp.ne.s32.totalorder %s57, %s59
    %p66 = scmp.eq.s32.totalorder %s14, 1
    %p67 = por %p65, %p66
    %p68 = scmp.ne.s32.totalorder %s59, %s60
    %p69 = scmp.eq.s32.totalorder %s14, 0
    %p70 = por %p68, %p69
    %p71 = scmp.ne.s32.totalorder %s59, %s60
    %p72 = scmp.eq.s32.totalorder %s15, 1
    %p73 = por %p71, %p72
    %p75 = scmp.ne.s32.totalorder %s60, %s74
    %p76 = scmp.eq.s32.totalorder %s15, 0
    %p77 = por %p75, %p76
    %s79 = sadd.s32 %s78, 1
    %p82 = scmp.eq.s32.totalorder %s9, 1
    %p83 = scmp.ne.s32.totalorder %s78, %s80
    %p84 = scmp.eq.s32.totalorder %s9, 0
    %p85 = por %p83, %p84
    %p86 = scmp.ne.s32.totalorder %s78, %s80
    %p87 = scmp.eq.s32.totalorder %s14, 1
    %p88 = por %p86, %p87
    %p89 = scmp.ne.s32.totalorder %s80, %s81
    %p90 = scmp.eq.s32.totalorder %s14, 0
    %p91 = por %p89, %p90
    %p92 = scmp.ne.s32.totalorder %s80, %s81
    %p93 = scmp.eq.s32.totalorder %s15, 1
    %p94 = por %p92, %p93
    %p96 = scmp.ne.s32.totalorder %s81, %s95
    %p97 = scmp.eq.s32.totalorder %s15, 0
    %p98 = por %p96, %p97
    %s99 = ssub.s32 %s16, %s28
    %s100 = ssub.s32 %s17, %s24
    %s101 = sor.u32 %s99, %s100
    %p102 = scmp.eq.s32.totalorder %s101, 0
    %s104 = sadd.s32 %s103, 1
    %s105 = scalar_select %p102, %s103, %s104
    %p108 = pneg %p102
    %p109 = scmp.eq.s32.totalorder %s9, 1
    %p110 = por %p108, %p109
    %p111 = scmp.ne.s32.totalorder %s103, %s106
    %p112 = scmp.eq.s32.totalorder %s9, 0
    %p113 = por %p111, %p112
    %p114 = scmp.ne.s32.totalorder %s103, %s106
    %p115 = scmp.eq.s32.totalorder %s14, 1
    %p116 = por %p114, %p115
    %p117 = scmp.ne.s32.totalorder %s106, %s107
    %p118 = scmp.eq.s32.totalorder %s14, 0
    %p119 = por %p117, %p118
    %p120 = scmp.ne.s32.totalorder %s106, %s107
    %p121 = scmp.eq.s32.totalorder %s15, 1
    %p122 = por %p120, %p121
    %p124 = scmp.ne.s32.totalorder %s107, %s123
    %p125 = scmp.eq.s32.totalorder %s15, 0
    %p126 = por %p124, %p125
    %p127 = scmp.le.s32.totalorder 1, %s9
    %p128 = scmp.lt.s32.totalorder %s9, 3
    %p129 = pnand %p127, %p128
    %p130 = pneg %p129
    // Predicated region
    $region9: #{backbone_base_forward.4} parent=5 // pred_check
      _
    $region10: #{backbone_base_forward.4} parent=5 // pred_check_branch
      %132 = sbr.rel (%p129) target = $region12
    $region11: #{backbone_base_forward.4} parent=5 // pred_region
      %s133 = ssub.s32 %s9, 1
      // Predicated region
      $region13: #{backbone_base_forward.4} parent=11 // pred_check
        %p134 = pneg %p70
      $region14: #{backbone_base_forward.4} parent=11 // pred_check_branch
        %136 = sbr.rel (%p134) target = $region16
      $region15: #{backbone_base_forward.4} parent=11 // pred_region
        _
      $region16: #{backbone_base_forward.4} parent=11 // pred_fallthru
        _
      // Predicated region
      $region17: #{backbone_base_forward.4} parent=11 // pred_check
        %p137 = pneg %p91
      $region18: #{backbone_base_forward.4} parent=11 // pred_check_branch
        %139 = sbr.rel (%p137) target = $region20
      $region19: #{backbone_base_forward.4} parent=11 // pred_region
        _
      $region20: #{backbone_base_forward.4} parent=11 // pred_fallthru
        _
    $region12: #{backbone_base_forward.4} parent=5 // pred_fallthru
      _
    %p140 = scmp.lt.s32.totalorder %s9, 2
    // Predicated region
    $region21: #{backbone_base_forward.4} parent=5 // pred_check
      %p141 = pneg %p140
    $region22: #{backbone_base_forward.4} parent=5 // pred_check_branch
      %143 = sbr.rel (%p141) target = $region24
    $region23: #{backbone_base_forward.4} parent=5 // pred_region
      // Predicated region
      $region25: #{backbone_base_forward.4} parent=23 // pred_check
        %p144 = pneg %p43
      $region26: #{backbone_base_forward.4} parent=23 // pred_check_branch
        %146 = sbr.rel (%p144) target = $region28
      $region27: #{backbone_base_forward.4} parent=23 // pred_region
        %p147 = scmp.lt.s32.totalorder %s16, 1
        %s148 = scalar_select %p147, %s16, 1
        %p149 = scmp.lt.s32.totalorder %s17, 0
        %s150 = scalar_select %p149, %s17, 0
        %s151 = smul.addr %s150, 18
        %s152 = smul.addr %s148, 18
        %s153 = sadd.s32 %s151, %s152
        %s154 = smul.addr %s153, 4
        %s155 = scalar_lea.vmem %s0, %s154
      $region28: #{backbone_base_forward.4} parent=23 // pred_fallthru
        _
    $region24: #{backbone_base_forward.4} parent=5 // pred_fallthru
      _
    %p156 = scmp.le.s32.totalorder 1, %s9
    %p157 = scmp.lt.s32.totalorder %s9, 3
    %p158 = pnand %p156, %p157
    %p159 = pneg %p158
    // Predicated region
    $region29: #{backbone_base_forward.4} parent=5 // pred_check
      _
    $region30: #{backbone_base_forward.4} parent=5 // pred_check_branch
      %161 = sbr.rel (%p158) target = $region32
    $region31: #{backbone_base_forward.4} parent=5 // pred_region
      %s162 = ssub.s32 %s9, 1
      %p163 = scmp.lt.s32.totalorder %s18, 1
      %s164 = scalar_select %p163, %s18, 1
      %p165 = scmp.lt.s32.totalorder %s19, 0
      %s166 = scalar_select %p165, %s19, 0
      %s167 = smul.addr %s166, 18
      %s168 = smul.addr %s164, 18
      %s169 = sadd.s32 %s167, %s168
      %s170 = smul.addr %s169, 4
      %s171 = scalar_lea.vmem %s0, %s170
      %p172 = pneg %p49
      %p173 = pneg %p46
      %p174 = pneg %p70
      %p175 = pneg %p67
      %p176 = pneg %p91
      %p177 = pneg %p88
      %p178 = pneg %p119
      %p179 = pneg %p116
      %s180 = smul.u32 8, %s19
      %p181 = scmp.lt.s32.totalorder %s18, 1
      %s182 = scalar_select %p181, %s18, 1
      %p183 = scmp.lt.s32.totalorder %s180, 7
      %s184 = scalar_select %p183, %s180, 7
      %s185 = smul.addr %s182, 8
      %s186 = sadd.s32 %s184, %s185
      %s187 = smul.addr %s186, 4
      %s188 = scalar_lea.vmem %s3, %s187
      %p189 = scmp.lt.s32.totalorder %s18, 1
      %s190 = scalar_select %p189, %s18, 1
      %p191 = scmp.lt.s32.totalorder %s19, 0
      %s192 = scalar_select %p191, %s19, 0
      %s193 = smul.addr %s192, 18
      %s194 = smul.addr %s190, 18
      %s195 = sadd.s32 %s193, %s194
      %s196 = smul.addr %s195, 4
      %s197 = scalar_lea.vmem %s0, %s196
      %s198 = smul.u32 8, %s19
      %p199 = scmp.lt.s32.totalorder %s18, 1
      %s200 = scalar_select %p199, %s18, 1
      %p201 = scmp.lt.s32.totalorder %s198, 7
      %s202 = scalar_select %p201, %s198, 7
      %s203 = smul.addr %s200, 8
      %s204 = sadd.s32 %s202, %s203
      %s205 = smul.addr %s204, 4
      %s206 = scalar_lea.vmem %s3, %s205
      %s207 = smul.u32 8, %s19
      %v209 = vld [vmem:[%s197] sm:$0xf]
      %v210 = vld [vmem:[%s197 + $0x8] sm:$0xf]
      %v211 = vld [vmem:[%s197 + $0x10] sm:$0xf]
      %v212 = vld [vmem:[%s197 + $0x18] sm:$0xf]
      %v213 = vld [vmem:[%s197 + $0x20] sm:$0xf]
      %v214 = vld [vmem:[%s197 + $0x28] sm:$0xf]
      %v215 = vld [vmem:[%s197 + $0x30] sm:$0xf]
      %v216 = vld [vmem:[%s197 + $0x38] sm:$0xf]
      %v217 = vld [vmem:[%s197 + $0x4] sm:$0x1]
      %v218 = vld [vmem:[%s197 + $0xc] sm:$0x1]
      %v219 = vld [vmem:[%s197 + $0x14] sm:$0x1]
      %v220 = vld [vmem:[%s197 + $0x1c] sm:$0x1]
      %v221 = vld [vmem:[%s197 + $0x24] sm:$0x1]
      %v222 = vld [vmem:[%s197 + $0x2c] sm:$0x1]
      %v223 = vld [vmem:[%s197 + $0x34] sm:$0x1]
      %v224 = vld [vmem:[%s197 + $0x3c] sm:$0x1]
      %s225 = scalar_lea.vmem %s197, 8
      %v226 = vld [vmem:[%s225] sm:$0xf]
      %v227 = vld [vmem:[%s225 + $0x8] sm:$0xf]
      %v228 = vld [vmem:[%s225 + $0x10] sm:$0xf]
      %v229 = vld [vmem:[%s225 + $0x18] sm:$0xf]
      %v230 = vld [vmem:[%s225 + $0x20] sm:$0xf]
      %v231 = vld [vmem:[%s225 + $0x28] sm:$0xf]
      %v232 = vld [vmem:[%s225 + $0x30] sm:$0xf]
      %v233 = vld [vmem:[%s225 + $0x38] sm:$0xf]
      %v234 = vld [vmem:[%s225 + $0x4] sm:$0x1]
      %v235 = vld [vmem:[%s225 + $0xc] sm:$0x1]
      %v236 = vld [vmem:[%s225 + $0x14] sm:$0x1]
      %v237 = vld [vmem:[%s225 + $0x1c] sm:$0x1]
      %v238 = vld [vmem:[%s225 + $0x24] sm:$0x1]
      %v239 = vld [vmem:[%s225 + $0x2c] sm:$0x1]
      %v240 = vld [vmem:[%s225 + $0x34] sm:$0x1]
      %v241 = vld [vmem:[%s225 + $0x3c] sm:$0x1]
      %v258 = vunpack.c.l.b16 %v209
      %v259 = vunpack.c.l.b16 %v217
      %v260 = vunpack.c.l.b16 %v210
      %v261 = vunpack.c.l.b16 %v218
      %v262 = vunpack.c.l.b16 %v211
      %v263 = vunpack.c.l.b16 %v219
      %v264 = vunpack.c.l.b16 %v212
      %v265 = vunpack.c.l.b16 %v220
      %v266 = vunpack.c.l.b16 %v213
      %v267 = vunpack.c.l.b16 %v221
      %v268 = vunpack.c.l.b16 %v214
      %v269 = vunpack.c.l.b16 %v222
      %v270 = vunpack.c.l.b16 %v215
      %v271 = vunpack.c.l.b16 %v223
      %v272 = vunpack.c.l.b16 %v216
      %v273 = vunpack.c.l.b16 %v224
      %v274 = vpack.c.b16 %v259, %v258
      %v275 = vpack.c.b16 %v261, %v260
      %v276 = vpack.c.b16 %v263, %v262
      %v277 = vpack.c.b16 %v265, %v264
      %v278 = vpack.c.b16 %v267, %v266
      %v279 = vpack.c.b16 %v269, %v268
      %v280 = vpack.c.b16 %v271, %v270
      %v281 = vpack.c.b16 %v273, %v272
      %v283 = vshrl.u32 %v274, 16
      %v285 = vshll.u32 %v274, 16
      %v287 = vrot.slane %v285, 1
      %v288 = vor.u32 %v283, %v287
      %v290 = vshrl.u32 %v275, 16
      %v292 = vshll.u32 %v275, 16
      %v294 = vrot.slane %v292, 1
      %v295 = vor.u32 %v290, %v294
      %v297 = vshrl.u32 %v276, 16
      %v299 = vshll.u32 %v276, 16
      %v301 = vrot.slane %v299, 1
      %v302 = vor.u32 %v297, %v301
      %v304 = vshrl.u32 %v277, 16
      %v306 = vshll.u32 %v277, 16
      %v308 = vrot.slane %v306, 1
      %v309 = vor.u32 %v304, %v308
      %v311 = vshrl.u32 %v278, 16
      %v313 = vshll.u32 %v278, 16
      %v315 = vrot.slane %v313, 1
      %v316 = vor.u32 %v311, %v315
      %v318 = vshrl.u32 %v279, 16
      %v320 = vshll.u32 %v279, 16
      %v322 = vrot.slane %v320, 1
      %v323 = vor.u32 %v318, %v322
      %v325 = vshrl.u32 %v280, 16
      %v327 = vshll.u32 %v280, 16
      %v329 = vrot.slane %v327, 1
      %v330 = vor.u32 %v325, %v329
      %v332 = vshrl.u32 %v281, 16
      %v334 = vshll.u32 %v281, 16
      %v336 = vrot.slane %v334, 1
      %v337 = vor.u32 %v332, %v336
      %338 = vrot.lane.b32.xlu0 %v288, 6
      %v339 = vpop.permute.xlu0 %338
      %340 = vrot.lane.b32.xlu0 %v295, 6
      %v341 = vpop.permute.xlu0 %340
      %342 = vrot.lane.b32.xlu0 %v302, 6
      %v343 = vpop.permute.xlu0 %342
      %344 = vrot.lane.b32.xlu0 %v309, 6
      %v345 = vpop.permute.xlu0 %344
      %346 = vrot.lane.b32.xlu0 %v316, 6
      %v347 = vpop.permute.xlu0 %346
      %348 = vrot.lane.b32.xlu0 %v323, 6
      %v349 = vpop.permute.xlu0 %348
      %350 = vrot.lane.b32.xlu0 %v330, 6
      %v351 = vpop.permute.xlu0 %350
      %352 = vrot.lane.b32.xlu0 %v337, 6
      %v353 = vpop.permute.xlu0 %352
      %v354 = vpack.c.b16 %v258, %v258
      %v355 = vpack.c.b16 %v260, %v260
      %v356 = vpack.c.b16 %v262, %v262
      %v357 = vpack.c.b16 %v264, %v264
      %v358 = vpack.c.b16 %v266, %v266
      %v359 = vpack.c.b16 %v268, %v268
      %v360 = vpack.c.b16 %v270, %v270
      %v361 = vpack.c.b16 %v272, %v272
      %362 = vrot.lane.b32.xlu0 %v354, 3
      %v363 = vpop.permute.xlu0 %362
      %364 = vrot.lane.b32.xlu0 %v355, 3
      %v365 = vpop.permute.xlu0 %364
      %366 = vrot.lane.b32.xlu0 %v356, 3
      %v367 = vpop.permute.xlu0 %366
      %368 = vrot.lane.b32.xlu0 %v357, 3
      %v369 = vpop.permute.xlu0 %368
      %370 = vrot.lane.b32.xlu0 %v358, 3
      %v371 = vpop.permute.xlu0 %370
      %372 = vrot.lane.b32.xlu0 %v359, 3
      %v373 = vpop.permute.xlu0 %372
      %374 = vrot.lane.b32.xlu0 %v360, 3
      %v375 = vpop.permute.xlu0 %374
      %376 = vrot.lane.b32.xlu0 %v361, 3
      %v377 = vpop.permute.xlu0 %376
      %378 = vrot.lane.b32.xlu0 %v288, 9
      %v379 = vpop.permute.xlu0 %378
      %380 = vrot.lane.b32.xlu0 %v295, 9
      %v381 = vpop.permute.xlu0 %380
      %382 = vrot.lane.b32.xlu0 %v302, 9
      %v383 = vpop.permute.xlu0 %382
      %384 = vrot.lane.b32.xlu0 %v309, 9
      %v385 = vpop.permute.xlu0 %384
      %386 = vrot.lane.b32.xlu0 %v316, 9
      %v387 = vpop.permute.xlu0 %386
      %388 = vrot.lane.b32.xlu0 %v323, 9
      %v389 = vpop.permute.xlu0 %388
      %390 = vrot.lane.b32.xlu0 %v330, 9
      %v391 = vpop.permute.xlu0 %390
      %392 = vrot.lane.b32.xlu0 %v337, 9
      %v393 = vpop.permute.xlu0 %392
      %v402 = vunpack.c.l.b16 %v226
      %v403 = vunpack.c.l.b16 %v227
      %v404 = vunpack.c.l.b16 %v228
      %v405 = vunpack.c.l.b16 %v229
      %v406 = vunpack.c.l.b16 %v230
      %v407 = vunpack.c.l.b16 %v231
      %v408 = vunpack.c.l.b16 %v232
      %v409 = vunpack.c.l.b16 %v233
      %v410 = vpack.c.b16 %v402, %v402
      %v411 = vpack.c.b16 %v403, %v403
      %v412 = vpack.c.b16 %v404, %v404
      %v413 = vpack.c.b16 %v405, %v405
      %v414 = vpack.c.b16 %v406, %v406
      %v415 = vpack.c.b16 %v407, %v407
      %v416 = vpack.c.b16 %v408, %v408
      %v417 = vpack.c.b16 %v409, %v409
      %418 = vrot.lane.b32.xlu0 %v410, 18
      %v419 = vpop.permute.xlu0 %418
      %420 = vrot.lane.b32.xlu0 %v411, 18
      %v421 = vpop.permute.xlu0 %420
      %422 = vrot.lane.b32.xlu0 %v412, 18
      %v423 = vpop.permute.xlu0 %422
      %424 = vrot.lane.b32.xlu0 %v413, 18
      %v425 = vpop.permute.xlu0 %424
      %426 = vrot.lane.b32.xlu0 %v414, 18
      %v427 = vpop.permute.xlu0 %426
      %428 = vrot.lane.b32.xlu0 %v415, 18
      %v429 = vpop.permute.xlu0 %428
      %430 = vrot.lane.b32.xlu0 %v416, 18
      %v431 = vpop.permute.xlu0 %430
      %432 = vrot.lane.b32.xlu0 %v417, 18
      %v433 = vpop.permute.xlu0 %432
      %v442 = vunpack.c.l.b16 %v234
      %v443 = vunpack.c.l.b16 %v235
      %v444 = vunpack.c.l.b16 %v236
      %v445 = vunpack.c.l.b16 %v237
      %v446 = vunpack.c.l.b16 %v238
      %v447 = vunpack.c.l.b16 %v239
      %v448 = vunpack.c.l.b16 %v240
      %v449 = vunpack.c.l.b16 %v241
      %v450 = vpack.c.b16 %v442, %v402
      %v451 = vpack.c.b16 %v443, %v403
      %v452 = vpack.c.b16 %v444, %v404
      %v453 = vpack.c.b16 %v445, %v405
      %v454 = vpack.c.b16 %v446, %v406
      %v455 = vpack.c.b16 %v447, %v407
      %v456 = vpack.c.b16 %v448, %v408
      %v457 = vpack.c.b16 %v449, %v409
      %v459 = vshrl.u32 %v450, 16
      %v461 = vshll.u32 %v450, 16
      %v463 = vrot.slane %v461, 1
      %v464 = vor.u32 %v459, %v463
      %v466 = vshrl.u32 %v451, 16
      %v468 = vshll.u32 %v451, 16
      %v470 = vrot.slane %v468, 1
      %v471 = vor.u32 %v466, %v470
      %v473 = vshrl.u32 %v452, 16
      %v475 = vshll.u32 %v452, 16
      %v477 = vrot.slane %v475, 1
      %v478 = vor.u32 %v473, %v477
      %v480 = vshrl.u32 %v453, 16
      %v482 = vshll.u32 %v453, 16
      %v484 = vrot.slane %v482, 1
      %v485 = vor.u32 %v480, %v484
      %v487 = vshrl.u32 %v454, 16
      %v489 = vshll.u32 %v454, 16
      %v491 = vrot.slane %v489, 1
      %v492 = vor.u32 %v487, %v491
      %v494 = vshrl.u32 %v455, 16
      %v496 = vshll.u32 %v455, 16
      %v498 = vrot.slane %v496, 1
      %v499 = vor.u32 %v494, %v498
      %v501 = vshrl.u32 %v456, 16
      %v503 = vshll.u32 %v456, 16
      %v505 = vrot.slane %v503, 1
      %v506 = vor.u32 %v501, %v505
      %v508 = vshrl.u32 %v457, 16
      %v510 = vshll.u32 %v457, 16
      %v512 = vrot.slane %v510, 1
      %v513 = vor.u32 %v508, %v512
      %514 = vrot.lane.b32.xlu0 %v464, 24
      %v515 = vpop.permute.xlu0 %514
      %516 = vrot.lane.b32.xlu0 %v471, 24
      %v517 = vpop.permute.xlu0 %516
      %518 = vrot.lane.b32.xlu0 %v478, 24
      %v519 = vpop.permute.xlu0 %518
      %520 = vrot.lane.b32.xlu0 %v485, 24
      %v521 = vpop.permute.xlu0 %520
      %522 = vrot.lane.b32.xlu0 %v492, 24
      %v523 = vpop.permute.xlu0 %522
      %524 = vrot.lane.b32.xlu0 %v499, 24
      %v525 = vpop.permute.xlu0 %524
      %526 = vrot.lane.b32.xlu0 %v506, 24
      %v527 = vpop.permute.xlu0 %526
      %528 = vrot.lane.b32.xlu0 %v513, 24
      %v529 = vpop.permute.xlu0 %528
      %vm538 = vcmask 48128
      %v540 = vsel %vm538, %v209, %v339
      %v542 = vsel %vm538, %v210, %v341
      %v544 = vsel %vm538, %v211, %v343
      %v546 = vsel %vm538, %v212, %v345
      %v548 = vsel %vm538, %v213, %v347
      %v550 = vsel %vm538, %v214, %v349
      %v552 = vsel %vm538, %v215, %v351
      %v554 = vsel %vm538, %v216, %v353
      %vm555 = vcmask 72704
      %v557 = vsel %vm555, %v540, %v363
      %v559 = vsel %vm555, %v542, %v365
      %v561 = vsel %vm555, %v544, %v367
      %v563 = vsel %vm555, %v546, %v369
      %v565 = vsel %vm555, %v548, %v371
      %v567 = vsel %vm555, %v550, %v373
      %v569 = vsel %vm555, %v552, %v375
      %v571 = vsel %vm555, %v554, %v377
      %vm572 = vcmask 97280
      %v573 = vsel %vm572, %v557, %v363
      %v574 = vsel %vm572, %v559, %v365
      %v575 = vsel %vm572, %v561, %v367
      %v576 = vsel %vm572, %v563, %v369
      %v577 = vsel %vm572, %v565, %v371
      %v578 = vsel %vm572, %v567, %v373
      %v579 = vsel %vm572, %v569, %v375
      %v580 = vsel %vm572, %v571, %v377
      %vm581 = vcmask 121856
      %v583 = vsel %vm581, %v573, %v379
      %v585 = vsel %vm581, %v574, %v381
      %v587 = vsel %vm581, %v575, %v383
      %v589 = vsel %vm581, %v576, %v385
      %v591 = vsel %vm581, %v577, %v387
      %v593 = vsel %vm581, %v578, %v389
      %v595 = vsel %vm581, %v579, %v391
      %v597 = vsel %vm581, %v580, %v393
      %vm598 = vcmask 146432
      %v600 = vsel %vm598, %v583, %v419
      %v602 = vsel %vm598, %v585, %v421
      %v604 = vsel %vm598, %v587, %v423
      %v606 = vsel %vm598, %v589, %v425
      %v608 = vsel %vm598, %v591, %v427
      %v610 = vsel %vm598, %v593, %v429
      %v612 = vsel %vm598, %v595, %v431
      %v614 = vsel %vm598, %v597, %v433
      %vm615 = vcmask 171008
      %v616 = vsel %vm615, %v600, %v419
      %v617 = vsel %vm615, %v602, %v421
      %v618 = vsel %vm615, %v604, %v423
      %v619 = vsel %vm615, %v606, %v425
      %v620 = vsel %vm615, %v608, %v427
      %v621 = vsel %vm615, %v610, %v429
      %v622 = vsel %vm615, %v612, %v431
      %v623 = vsel %vm615, %v614, %v433
      %vm624 = vcmask 195584
      %v626 = vsel %vm624, %v616, %v515
      %v628 = vsel %vm624, %v617, %v517
      %v630 = vsel %vm624, %v618, %v519
      %v632 = vsel %vm624, %v619, %v521
      %v634 = vsel %vm624, %v620, %v523
      %v636 = vsel %vm624, %v621, %v525
      %v638 = vsel %vm624, %v622, %v527
      %v640 = vsel %vm624, %v623, %v529
      %v641 = vld [vmem:[%s1] sm:$0xf]
      %v642 = vld [vmem:[%s1 + $0x4] sm:$0xf]
      %v643 = vld [vmem:[%s1 + $0x8] sm:$0xf]
      %v644 = vld [vmem:[%s1 + $0xc] sm:$0x3]
      %v645 = vld [vmem:[%s2] sm:$0x1]
      %v647 = vlaneseq
      %v648 = vshrl.u32 %v647, 7
      %v649 = vsub.s32 0, %v648
      %v650 = vrot.slane %v645, %v649
      %v660 = vunpack.c.l.b16 %v626
      %v661 = vunpack.c.l.b16 %v628
      %v662 = vunpack.c.l.b16 %v630
      %v663 = vunpack.c.l.b16 %v632
      %v664 = vunpack.c.l.b16 %v634
      %v665 = vunpack.c.l.b16 %v636
      %v666 = vunpack.c.l.b16 %v638
      %v667 = vunpack.c.l.b16 %v640
      %v668 = vpack.c.b16 %v661, %v660
      %v669 = vpack.c.b16 %v663, %v662
      %v670 = vpack.c.b16 %v665, %v664
      %v671 = vpack.c.b16 %v667, %v666
      %v676 = vunpack.c.l.b16 %v641
      %v677 = vunpack.c.l.b16 %v642
      %v678 = vunpack.c.l.b16 %v643
      %v679 = vunpack.c.l.b16 %v644
      %v680 = vpack.c.b16 %v677, %v676
      %v681 = vpack.c.b16 %v679, %v678
      %vm683 = vcmask 220160
      %v685 = vsel %vm683, %v668, 0
      %v688 = vsel %vm683, %v669, 0
      %v691 = vsel %vm683, %v670, 0
      %v694 = vsel %vm683, %v671, 0
      %vm696 = vcmask 1044480
      %vm697 = vcmask 1045504
      %v698 = vsel %vm696, 4294967295, 65535
      %v699 = vsel %vm697, %v698, 0
      %v701 = vand.u32 %v681, %v699
      %703 = vmatprep.subr.bf16.mxu0 0
      %704 = vmatpush1.bf16.msra.mxu0 %v680
      %705 = vmatprep.subr.bf16.mxu0 0
      %706 = vmatpush1.bf16.msra.mxu0 %v701
      %707 = vmatprep.subr.bf16.mxu0 0
      %708 = vmatpush1.bf16.msra.mxu0 0
      %709 = vmatprep.subr.bf16.mxu0 0
      %710 = vmatpush1.bf16.msra.mxu0 0
      %711 = vmatprep.subr.bf16.mxu0 0
      %712 = vmatpush1.bf16.msra.mxu0 0
      %713 = vmatprep.subr.bf16.mxu0 0
      %714 = vmatpush1.bf16.msra.mxu0 0
      %715 = vmatprep.subr.bf16.mxu0 0
      %716 = vmatpush1.bf16.msra.mxu0 0
      %717 = vmatprep.subr.bf16.mxu0 0
      %718 = vmatpush1.bf16.msra.mxu0 0
      %719 = vmatprep.subr.bf16.mxu0 0
      %720 = vmatpush1.bf16.msra.mxu0 0
      %721 = vmatprep.subr.bf16.mxu0 0
      %722 = vmatpush1.bf16.msra.mxu0 0
      %723 = vmatprep.subr.bf16.mxu0 0
      %724 = vmatpush1.bf16.msra.mxu0 0
      %725 = vmatprep.subr.bf16.mxu0 0
      %726 = vmatpush1.bf16.msra.mxu0 0
      %727 = vmatprep.subr.bf16.mxu0 0
      %728 = vmatpush1.bf16.msra.mxu0 0
      %729 = vmatprep.subr.bf16.mxu0 0
      %730 = vmatpush1.bf16.msra.mxu0 0
      %731 = vmatprep.subr.bf16.mxu0 0
      %732 = vmatpush1.bf16.msra.mxu0 0
      %733 = vmatprep.subr.bf16.mxu0 0
      %734 = vmatpush1.bf16.msra.mxu0 0
      %735 = vmatprep.mubr.bf16.mxu0 0
      %736 = vmatmul.mubr.bf16.gmra.mrb[0].mxu0 %v685
      %v737 = vpop.f32.mrb[0].mxu0
      %v738 = vadd.f32 %v650, %v737
      %v739 = vpop.f32.mrb[0].mxu0
      %v740 = vpop.f32.mrb[0].mxu0
      %v741 = vadd.f32 %v650, %v740
      %v742 = vpop.f32.mrb[0].mxu0
      %743 = vmatprep.mubr.bf16.mxu0 0
      %744 = vmatmul.mubr.bf16.gmra.mrb[0].mxu0 %v688
      %v745 = vpop.f32.mrb[0].mxu0
      %v746 = vadd.f32 %v650, %v745
      %v747 = vpop.f32.mrb[0].mxu0
      %v748 = vpop.f32.mrb[0].mxu0
      %v749 = vadd.f32 %v650, %v748
      %v750 = vpop.f32.mrb[0].mxu0
      %751 = vmatprep.mubr.bf16.mxu0 0
      %752 = vmatmul.mubr.bf16.gmra.mrb[0].mxu0 %v691
      %v753 = vpop.f32.mrb[0].mxu0
      %v754 = vadd.f32 %v650, %v753
      %v755 = vpop.f32.mrb[0].mxu0
      %v756 = vpop.f32.mrb[0].mxu0
      %v757 = vadd.f32 %v650, %v756
      %v758 = vpop.f32.mrb[0].mxu0
      %759 = vmatprep.mubr.bf16.mxu0 0
      %760 = vmatmul.mubr.bf16.gmra.mrb[0].mxu0 %v694
      %v761 = vpop.f32.mrb[0].mxu0
      %v762 = vadd.f32 %v650, %v761
      %v763 = vpop.f32.mrb[0].mxu0
      %v764 = vpop.f32.mrb[0].mxu0
      %v765 = vadd.f32 %v650, %v764
      %v766 = vpop.f32.mrb[0].mxu0
      %767 = vdwg.mxu0
      %v768 = vmax.f32 %v738, 0.0
      %v769 = vmax.f32 %v741, 0.0
      %v770 = vmax.f32 %v746, 0.0
      %v771 = vmax.f32 %v749, 0.0
      %v772 = vmax.f32 %v754, 0.0
      %v773 = vmax.f32 %v757, 0.0
      %v774 = vmax.f32 %v762, 0.0
      %v775 = vmax.f32 %v765, 0.0
      %v776 = vpack.c.bf16 %v768, %v768
      %v777 = vpack.c.bf16 %v769, %v769
      %v778 = vpack.c.bf16 %v770, %v770
      %v779 = vpack.c.bf16 %v771, %v771
      %v780 = vpack.c.bf16 %v772, %v772
      %v781 = vpack.c.bf16 %v773, %v773
      %v782 = vpack.c.bf16 %v774, %v774
      %v783 = vpack.c.bf16 %v775, %v775
      %vm784 = vcmask 60416
      %785 = vst.msk [vmem:[%s206] sm:$0xf] %vm784, %v776
      %786 = vst.msk [vmem:[%s206 + $0x4] sm:$0xf] %vm784, %v777
      %787 = vst.msk [vmem:[%s206 + $0x8] sm:$0xf] %vm784, %v778
      %788 = vst.msk [vmem:[%s206 + $0xc] sm:$0xf] %vm784, %v779
      %789 = vst.msk [vmem:[%s206 + $0x10] sm:$0xf] %vm784, %v780
      %790 = vst.msk [vmem:[%s206 + $0x14] sm:$0xf] %vm784, %v781
      %791 = vst.msk [vmem:[%s206 + $0x18] sm:$0xf] %vm784, %v782
      %792 = vst.msk [vmem:[%s206 + $0x1c] sm:$0xf] %vm784, %v783
      %s793 = smul.u32 8, %s19
      %p794 = scmp.lt.s32.totalorder %s18, 1
      %s795 = scalar_select %p794, %s18, 1
      %p796 = scmp.lt.s32.totalorder %s793, 7
      %s797 = scalar_select %p796, %s793, 7
      %s798 = smul.addr %s795, 8
      %s799 = sadd.s32 %s797, %s798
      %s800 = smul.addr %s799, 4
      %s801 = scalar_lea.vmem %s3, %s800
      // Predicated region
      $region33: #{backbone_base_forward.4} parent=31 // pred_check
        %p802 = pneg %p116
      $region34: #{backbone_base_forward.4} parent=31 // pred_check_branch
        %804 = sbr.rel (%p802) target = $region36
      $region35: #{backbone_base_forward.4} parent=31 // pred_region
        %s805 = smul.u32 8, %s19
      $region36: #{backbone_base_forward.4} parent=31 // pred_fallthru
        _
    $region32: #{backbone_base_forward.4} parent=5 // pred_fallthru
      _
    %p806 = scmp.le.s32.totalorder 2, %s9
    // Predicated region
    $region37: #{backbone_base_forward.4} parent=5 // pred_check
      %p807 = pneg %p806
    $region38: #{backbone_base_forward.4} parent=5 // pred_check_branch
      %809 = sbr.rel (%p807) target = $region40
    $region39: #{backbone_base_forward.4} parent=5 // pred_region
      %s810 = ssub.s32 %s9, 2
      // Predicated region
      $region41: #{backbone_base_forward.4} parent=39 // pred_check
        %p811 = pneg %p122
      $region42: #{backbone_base_forward.4} parent=39 // pred_check_branch
        %813 = sbr.rel (%p811) target = $region44
      $region43: #{backbone_base_forward.4} parent=39 // pred_region
        %s814 = smul.u32 8, %s21
        %p815 = scmp.lt.s32.totalorder %s20, 1
        %s816 = scalar_select %p815, %s20, 1
        %p817 = scmp.lt.s32.totalorder %s814, 7
        %s818 = scalar_select %p817, %s814, 7
        %s819 = smul.addr %s816, 8
        %s820 = sadd.s32 %s818, %s819
        %s821 = smul.addr %s820, 4
        %s822 = scalar_lea.vmem %s3, %s821
      $region44: #{backbone_base_forward.4} parent=39 // pred_fallthru
        _
    $region40: #{backbone_base_forward.4} parent=5 // pred_fallthru
      _
  $region6: #{backbone_base_forward.4} parent=0 // loop_footer
    %s13 = sadd.s32 1, %s9
  $region7: #{backbone_base_forward.4} parent=0 // loop_footer_branch
    %8 = sbr.rel target = $region3
  $region8: #{backbone_base_forward.4} parent=0 // loop_exit
    _

// kernel: backbone_base_forward.5
$region0: #{backbone_base_forward.5}
  #allocation0 [shape = 'u32[]', space=smem, size = 0x4, offset = 0x4, fixed_abs, tag = 'smem constant byte address 0x4 - core index']
  #allocation1 [shape = 'u32[144,128]{1,0:T(1,128)}', space=vmem, size = 0x12000, scoped, tag = 'internal scratch']
  %s0 = inlined_call_operand.vmem [shape: bf16[2,1,5,5,32], index: 0, kind: input, shape index: {}]
  %s1 = inlined_call_operand.vmem [shape: bf16[72,16], index: 1, kind: input, shape index: {}]
  %s2 = inlined_call_operand.vmem [shape: f32[1,16], index: 2, kind: input, shape index: {}]
  %s3 = inlined_call_operand.vmem [shape: bf16[2,4,4,16], index: 3, kind: output, shape index: {}]
  %s4 = sld [smem:[#allocation0]]
  $region45: #{backbone_base_forward.5} parent=0
    _
  %s6 = ssub.s32 1, %s4
  %s7 = scalar_select 0, %s6, %s4
  loop: start=0, step=1, limit=4
  $region2: #{backbone_base_forward.5} parent=0 // loop_pre_header
    _
  $region3: #{backbone_base_forward.5} parent=0 // loop_header
    %s9 = sphi 0, %s13
    %p10 = scmp.ge.s32.totalorder %s9, 4
    %s16 = sphi 0, %s28
    %s17 = sphi 0, %s24
    %s18 = sphi 0, %s16
    %s19 = sphi 0, %s17
    %s20 = sphi 0, %s18
    %s21 = sphi 0, %s19
    %s33 = sphi 0, %s35
    %s36 = sphi 0, %s33
    %s37 = sphi 0, %s36
    %s53 = sphi 0, %s37
    %s57 = sphi 0, %s57
    %s59 = sphi 0, %s57
    %s60 = sphi 0, %s59
    %s74 = sphi 0, %s60
    %s78 = sphi 0, %s78
    %s80 = sphi 0, %s78
    %s81 = sphi 0, %s80
    %s95 = sphi 0, %s81
    %s103 = sphi 0, %s105
    %s106 = sphi 0, %s103
    %s107 = sphi 0, %s106
    %s123 = sphi 0, %s107
  $region4: #{backbone_base_forward.5} parent=0 // loop_header_branch
    %12 = sbr.rel (%p10) target = $region8
  $region5: #{backbone_base_forward.5} parent=0 // loop_body
    %s14 = ssub.s32 %s9, 1
    %s15 = ssub.s32 %s9, 2
    %s22 = sadd.s32 1, %s17
    %p23 = scmp.ge.s32.totalorder %s22, 1
    %s24 = scalar_select %p23, 0, %s22
    %s25 = sadd.s32 1, %s16
    %s26 = scalar_select %p23, %s25, %s16
    %p27 = scmp.ge.s32.totalorder %s26, 2
    %s28 = scalar_select %p27, 0, %s26
    %s29 = ssub.s32 %s16, %s28
    %s30 = ssub.s32 %s17, %s24
    %s31 = sor.u32 %s29, %s30
    %p32 = scmp.eq.s32.totalorder %s31, 0
    %s34 = sadd.s32 %s33, 1
    %s35 = scalar_select %p32, %s33, %s34
    %p38 = pneg %p32
    %p39 = scmp.eq.s32.totalorder %s9, 1
    %p40 = por %p38, %p39
    %p41 = scmp.ne.s32.totalorder %s33, %s36
    %p42 = scmp.eq.s32.totalorder %s9, 0
    %p43 = por %p41, %p42
    %p44 = scmp.ne.s32.totalorder %s33, %s36
    %p45 = scmp.eq.s32.totalorder %s14, 1
    %p46 = por %p44, %p45
    %p47 = scmp.ne.s32.totalorder %s36, %s37
    %p48 = scmp.eq.s32.totalorder %s14, 0
    %p49 = por %p47, %p48
    %p50 = scmp.ne.s32.totalorder %s36, %s37
    %p51 = scmp.eq.s32.totalorder %s15, 1
    %p52 = por %p50, %p51
    %p54 = scmp.ne.s32.totalorder %s37, %s53
    %p55 = scmp.eq.s32.totalorder %s15, 0
    %p56 = por %p54, %p55
    %s58 = sadd.s32 %s57, 1
    %p61 = scmp.eq.s32.totalorder %s9, 1
    %p62 = scmp.ne.s32.totalorder %s57, %s59
    %p63 = scmp.eq.s32.totalorder %s9, 0
    %p64 = por %p62, %p63
    %p65 = scmp.ne.s32.totalorder %s57, %s59
    %p66 = scmp.eq.s32.totalorder %s14, 1
    %p67 = por %p65, %p66
    %p68 = scmp.ne.s32.totalorder %s59, %s60
    %p69 = scmp.eq.s32.totalorder %s14, 0
    %p70 = por %p68, %p69
    %p71 = scmp.ne.s32.totalorder %s59, %s60
    %p72 = scmp.eq.s32.totalorder %s15, 1
    %p73 = por %p71, %p72
    %p75 = scmp.ne.s32.totalorder %s60, %s74
    %p76 = scmp.eq.s32.totalorder %s15, 0
    %p77 = por %p75, %p76
    %s79 = sadd.s32 %s78, 1
    %p82 = scmp.eq.s32.totalorder %s9, 1
    %p83 = scmp.ne.s32.totalorder %s78, %s80
    %p84 = scmp.eq.s32.totalorder %s9, 0
    %p85 = por %p83, %p84
    %p86 = scmp.ne.s32.totalorder %s78, %s80
    %p87 = scmp.eq.s32.totalorder %s14, 1
    %p88 = por %p86, %p87
    %p89 = scmp.ne.s32.totalorder %s80, %s81
    %p90 = scmp.eq.s32.totalorder %s14, 0
    %p91 = por %p89, %p90
    %p92 = scmp.ne.s32.totalorder %s80, %s81
    %p93 = scmp.eq.s32.totalorder %s15, 1
    %p94 = por %p92, %p93
    %p96 = scmp.ne.s32.totalorder %s81, %s95
    %p97 = scmp.eq.s32.totalorder %s15, 0
    %p98 = por %p96, %p97
    %s99 = ssub.s32 %s16, %s28
    %s100 = ssub.s32 %s17, %s24
    %s101 = sor.u32 %s99, %s100
    %p102 = scmp.eq.s32.totalorder %s101, 0
    %s104 = sadd.s32 %s103, 1
    %s105 = scalar_select %p102, %s103, %s104
    %p108 = pneg %p102
    %p109 = scmp.eq.s32.totalorder %s9, 1
    %p110 = por %p108, %p109
    %p111 = scmp.ne.s32.totalorder %s103, %s106
    %p112 = scmp.eq.s32.totalorder %s9, 0
    %p113 = por %p111, %p112
    %p114 = scmp.ne.s32.totalorder %s103, %s106
    %p115 = scmp.eq.s32.totalorder %s14, 1
    %p116 = por %p114, %p115
    %p117 = scmp.ne.s32.totalorder %s106, %s107
    %p118 = scmp.eq.s32.totalorder %s14, 0
    %p119 = por %p117, %p118
    %p120 = scmp.ne.s32.totalorder %s106, %s107
    %p121 = scmp.eq.s32.totalorder %s15, 1
    %p122 = por %p120, %p121
    %p124 = scmp.ne.s32.totalorder %s107, %s123
    %p125 = scmp.eq.s32.totalorder %s15, 0
    %p126 = por %p124, %p125
    %p127 = scmp.le.s32.totalorder 1, %s9
    %p128 = scmp.lt.s32.totalorder %s9, 3
    %p129 = pnand %p127, %p128
    %p130 = pneg %p129
    // Predicated region
    $region9: #{backbone_base_forward.5} parent=5 // pred_check
      _
    $region10: #{backbone_base_forward.5} parent=5 // pred_check_branch
      %132 = sbr.rel (%p129) target = $region12
    $region11: #{backbone_base_forward.5} parent=5 // pred_region
      %s133 = ssub.s32 %s9, 1
      // Predicated region
      $region13: #{backbone_base_forward.5} parent=11 // pred_check
        %p134 = pneg %p70
      $region14: #{backbone_base_forward.5} parent=11 // pred_check_branch
        %136 = sbr.rel (%p134) target = $region16
      $region15: #{backbone_base_forward.5} parent=11 // pred_region
        _
      $region16: #{backbone_base_forward.5} parent=11 // pred_fallthru
        _
      // Predicated region
      $region17: #{backbone_base_forward.5} parent=11 // pred_check
        %p137 = pneg %p91
      $region18: #{backbone_base_forward.5} parent=11 // pred_check_branch
        %139 = sbr.rel (%p137) target = $region20
      $region19: #{backbone_base_forward.5} parent=11 // pred_region
        _
      $region20: #{backbone_base_forward.5} parent=11 // pred_fallthru
        _
    $region12: #{backbone_base_forward.5} parent=5 // pred_fallthru
      _
    %p140 = scmp.lt.s32.totalorder %s9, 2
    // Predicated region
    $region21: #{backbone_base_forward.5} parent=5 // pred_check
      %p141 = pneg %p140
    $region22: #{backbone_base_forward.5} parent=5 // pred_check_branch
      %143 = sbr.rel (%p141) target = $region24
    $region23: #{backbone_base_forward.5} parent=5 // pred_region
      // Predicated region
      $region25: #{backbone_base_forward.5} parent=23 // pred_check
        %p144 = pneg %p43
      $region26: #{backbone_base_forward.5} parent=23 // pred_check_branch
        %146 = sbr.rel (%p144) target = $region28
      $region27: #{backbone_base_forward.5} parent=23 // pred_region
        %p147 = scmp.lt.s32.totalorder %s16, 1
        %s148 = scalar_select %p147, %s16, 1
        %p149 = scmp.lt.s32.totalorder %s17, 0
        %s150 = scalar_select %p149, %s17, 0
        %s151 = smul.addr %s150, 5
        %s152 = smul.addr %s148, 5
        %s153 = sadd.s32 %s151, %s152
        %s154 = smul.addr %s153, 4
        %s155 = scalar_lea.vmem %s0, %s154
      $region28: #{backbone_base_forward.5} parent=23 // pred_fallthru
        _
    $region24: #{backbone_base_forward.5} parent=5 // pred_fallthru
      _
    %p156 = scmp.le.s32.totalorder 1, %s9
    %p157 = scmp.lt.s32.totalorder %s9, 3
    %p158 = pnand %p156, %p157
    %p159 = pneg %p158
    // Predicated region
    $region29: #{backbone_base_forward.5} parent=5 // pred_check
      _
    $region30: #{backbone_base_forward.5} parent=5 // pred_check_branch
      %161 = sbr.rel (%p158) target = $region32
    $region31: #{backbone_base_forward.5} parent=5 // pred_region
      %s162 = ssub.s32 %s9, 1
      %p163 = scmp.lt.s32.totalorder %s18, 1
      %s164 = scalar_select %p163, %s18, 1
      %p165 = scmp.lt.s32.totalorder %s19, 0
      %s166 = scalar_select %p165, %s19, 0
      %s167 = smul.addr %s166, 5
      %s168 = smul.addr %s164, 5
      %s169 = sadd.s32 %s167, %s168
      %s170 = smul.addr %s169, 4
      %s171 = scalar_lea.vmem %s0, %s170
      %p172 = pneg %p49
      %p173 = pneg %p46
      %p174 = pneg %p70
      %p175 = pneg %p67
      %p176 = pneg %p91
      %p177 = pneg %p88
      %p178 = pneg %p119
      %p179 = pneg %p116
      %s180 = smul.u32 4, %s19
      %p181 = scmp.lt.s32.totalorder %s18, 1
      %s182 = scalar_select %p181, %s18, 1
      %p183 = scmp.lt.s32.totalorder %s180, 3
      %s184 = scalar_select %p183, %s180, 3
      %s185 = smul.addr %s182, 4
      %s186 = sadd.s32 %s184, %s185
      %s187 = smul.addr %s186, 2
      %s188 = scalar_lea.vmem %s3, %s187
      %p189 = scmp.lt.s32.totalorder %s18, 1
      %s190 = scalar_select %p189, %s18, 1
      %p191 = scmp.lt.s32.totalorder %s19, 0
      %s192 = scalar_select %p191, %s19, 0
      %s193 = smul.addr %s192, 5
      %s194 = smul.addr %s190, 5
      %s195 = sadd.s32 %s193, %s194
      %s196 = smul.addr %s195, 4
      %s197 = scalar_lea.vmem %s0, %s196
      %s198 = smul.u32 4, %s19
      %p199 = scmp.lt.s32.totalorder %s18, 1
      %s200 = scalar_select %p199, %s18, 1
      %p201 = scmp.lt.s32.totalorder %s198, 3
      %s202 = scalar_select %p201, %s198, 3
      %s203 = smul.addr %s200, 4
      %s204 = sadd.s32 %s202, %s203
      %s205 = smul.addr %s204, 2
      %s206 = scalar_lea.vmem %s3, %s205
      %s207 = smul.u32 4, %s19
      %v209 = vld [vmem:[%s197] sm:$0x3]
      %v210 = vld [vmem:[%s197 + $0x4] sm:$0x3]
      %v211 = vld [vmem:[%s197 + $0x8] sm:$0x3]
      %v212 = vld [vmem:[%s197 + $0xc] sm:$0x3]
      %v213 = vld [vmem:[%s197] sm:$0x7]
      %v214 = vld [vmem:[%s197 + $0x4] sm:$0x7]
      %v215 = vld [vmem:[%s197 + $0x8] sm:$0x7]
      %v216 = vld [vmem:[%s197 + $0xc] sm:$0x7]
      %s217 = scalar_lea.vmem %s197, 4
      %v218 = vld [vmem:[%s217] sm:$0x3]
      %v219 = vld [vmem:[%s217 + $0x4] sm:$0x3]
      %v220 = vld [vmem:[%s217 + $0x8] sm:$0x3]
      %v221 = vld [vmem:[%s217 + $0xc] sm:$0x3]
      %v222 = vld [vmem:[%s217] sm:$0x7]
      %v223 = vld [vmem:[%s217 + $0x4] sm:$0x7]
      %v224 = vld [vmem:[%s217 + $0x8] sm:$0x7]
      %v225 = vld [vmem:[%s217 + $0xc] sm:$0x7]
      %v230 = vunpack.c.l.b16 %v213
      %v231 = vunpack.c.l.b16 %v214
      %v232 = vunpack.c.l.b16 %v215
      %v233 = vunpack.c.l.b16 %v216
      %v234 = vpack.c.b16 %v230, %v230
      %v235 = vpack.c.b16 %v231, %v231
      %v236 = vpack.c.b16 %v232, %v232
      %v237 = vpack.c.b16 %v233, %v233
      %v239 = vshrl.u32 %v234, 16
      %v241 = vshll.u32 %v234, 16
      %v243 = vrot.slane %v241, 1
      %v244 = vor.u32 %v239, %v243
      %v246 = vshrl.u32 %v235, 16
      %v248 = vshll.u32 %v235, 16
      %v250 = vrot.slane %v248, 1
      %v251 = vor.u32 %v246, %v250
      %v253 = vshrl.u32 %v236, 16
      %v255 = vshll.u32 %v236, 16
      %v257 = vrot.slane %v255, 1
      %v258 = vor.u32 %v253, %v257
      %v260 = vshrl.u32 %v237, 16
      %v262 = vshll.u32 %v237, 16
      %v264 = vrot.slane %v262, 1
      %v265 = vor.u32 %v260, %v264
      %266 = vrot.lane.b32.xlu0 %v244, 16
      %v267 = vpop.permute.xlu0 %266
      %268 = vrot.lane.b32.xlu0 %v251, 16
      %v269 = vpop.permute.xlu0 %268
      %270 = vrot.lane.b32.xlu0 %v258, 16
      %v271 = vpop.permute.xlu0 %270
      %272 = vrot.lane.b32.xlu0 %v265, 16
      %v273 = vpop.permute.xlu0 %272
      %v278 = vunpack.c.l.b16 %v209
      %v279 = vunpack.c.l.b16 %v210
      %v280 = vunpack.c.l.b16 %v211
      %v281 = vunpack.c.l.b16 %v212
      %v282 = vpack.c.b16 %v278, %v278
      %v283 = vpack.c.b16 %v279, %v279
      %v284 = vpack.c.b16 %v280, %v280
      %v285 = vpack.c.b16 %v281, %v281
      %286 = vrot.lane.b32.xlu0 %v282, 8
      %v287 = vpop.permute.xlu0 %286
      %288 = vrot.lane.b32.xlu0 %v283, 8
      %v289 = vpop.permute.xlu0 %288
      %290 = vrot.lane.b32.xlu0 %v284, 8
      %v291 = vpop.permute.xlu0 %290
      %292 = vrot.lane.b32.xlu0 %v285, 8
      %v293 = vpop.permute.xlu0 %292
      %294 = vrot.lane.b32.xlu0 %v244, 24
      %v295 = vpop.permute.xlu0 %294
      %296 = vrot.lane.b32.xlu0 %v251, 24
      %v297 = vpop.permute.xlu0 %296
      %298 = vrot.lane.b32.xlu0 %v258, 24
      %v299 = vpop.permute.xlu0 %298
      %300 = vrot.lane.b32.xlu0 %v265, 24
      %v301 = vpop.permute.xlu0 %300
      %v306 = vunpack.c.l.b16 %v218
      %v307 = vunpack.c.l.b16 %v219
      %v308 = vunpack.c.l.b16 %v220
      %v309 = vunpack.c.l.b16 %v221
      %v310 = vpack.c.b16 %v306, %v306
      %v311 = vpack.c.b16 %v307, %v307
      %v312 = vpack.c.b16 %v308, %v308
      %v313 = vpack.c.b16 %v309, %v309
      %314 = vrot.lane.b32.xlu0 %v310, 48
      %v315 = vpop.permute.xlu0 %314
      %316 = vrot.lane.b32.xlu0 %v311, 48
      %v317 = vpop.permute.xlu0 %316
      %318 = vrot.lane.b32.xlu0 %v312, 48
      %v319 = vpop.permute.xlu0 %318
      %320 = vrot.lane.b32.xlu0 %v313, 48
      %v321 = vpop.permute.xlu0 %320
      %v326 = vunpack.c.l.b16 %v222
      %v327 = vunpack.c.l.b16 %v223
      %v328 = vunpack.c.l.b16 %v224
      %v329 = vunpack.c.l.b16 %v225
      %v330 = vpack.c.b16 %v326, %v326
      %v331 = vpack.c.b16 %v327, %v327
      %v332 = vpack.c.b16 %v328, %v328
      %v333 = vpack.c.b16 %v329, %v329
      %v335 = vshrl.u32 %v330, 16
      %v337 = vshll.u32 %v330, 16
      %v339 = vrot.slane %v337, 1
      %v340 = vor.u32 %v335, %v339
      %v342 = vshrl.u32 %v331, 16
      %v344 = vshll.u32 %v331, 16
      %v346 = vrot.slane %v344, 1
      %v347 = vor.u32 %v342, %v346
      %v349 = vshrl.u32 %v332, 16
      %v351 = vshll.u32 %v332, 16
      %v353 = vrot.slane %v351, 1
      %v354 = vor.u32 %v349, %v353
      %v356 = vshrl.u32 %v333, 16
      %v358 = vshll.u32 %v333, 16
      %v360 = vrot.slane %v358, 1
      %v361 = vor.u32 %v356, %v360
      %362 = vrot.lane.b32.xlu0 %v340, 64
      %v363 = vpop.permute.xlu0 %362
      %364 = vrot.lane.b32.xlu0 %v347, 64
      %v365 = vpop.permute.xlu0 %364
      %366 = vrot.lane.b32.xlu0 %v354, 64
      %v367 = vpop.permute.xlu0 %366
      %368 = vrot.lane.b32.xlu0 %v361, 64
      %v369 = vpop.permute.xlu0 %368
      %vm374 = vcmask 130048
      %v376 = vsel %vm374, %v209, %v267
      %v378 = vsel %vm374, %v210, %v269
      %v380 = vsel %vm374, %v211, %v271
      %v382 = vsel %vm374, %v212, %v273
      %vm383 = vcmask 195584
      %v385 = vsel %vm383, %v376, %v287
      %v387 = vsel %vm383, %v378, %v289
      %v389 = vsel %vm383, %v380, %v291
      %v391 = vsel %vm383, %v382, %v293
      %vm392 = vcmask 261120
      %v393 = vsel %vm392, %v385, %v287
      %v394 = vsel %vm392, %v387, %v289
      %v395 = vsel %vm392, %v389, %v291
      %v396 = vsel %vm392, %v391, %v293
      %vm397 = vcmask 326656
      %v399 = vsel %vm397, %v393, %v295
      %v401 = vsel %vm397, %v394, %v297
      %v403 = vsel %vm397, %v395, %v299
      %v405 = vsel %vm397, %v396, %v301
      %vm406 = vcmask 392192
      %v408 = vsel %vm406, %v399, %v315
      %v410 = vsel %vm406, %v401, %v317
      %v412 = vsel %vm406, %v403, %v319
      %v414 = vsel %vm406, %v405, %v321
      %vm415 = vcmask 457728
      %v416 = vsel %vm415, %v408, %v315
      %v417 = vsel %vm415, %v410, %v317
      %v418 = vsel %vm415, %v412, %v319
      %v419 = vsel %vm415, %v414, %v321
      %vm420 = vcmask 523264
      %v422 = vsel %vm420, %v416, %v363
      %v424 = vsel %vm420, %v417, %v365
      %v426 = vsel %vm420, %v418, %v367
      %v428 = vsel %vm420, %v419, %v369
      %v429 = vld [vmem:[%s1] sm:$0xf]
      %v430 = vld [vmem:[%s1 + $0x4] sm:$0xf]
      %v431 = vld [vmem:[%s1 + $0x8] sm:$0xf]
      %v432 = vld [vmem:[%s1 + $0xc] sm:$0xf]
      %v433 = vld [vmem:[%s1 + $0x10] sm:$0xf]
      %v434 = vld [vmem:[%s1 + $0x14] sm:$0xf]
      %v435 = vld [vmem:[%s1 + $0x18] sm:$0xf]
      %v436 = vld [vmem:[%s1 + $0x1c] sm:$0xf]
      %v437 = vld [vmem:[%s1 + $0x20] sm:$0xf]
      %v438 = vld [vmem:[%s2] sm:$0x1]
      %v440 = vlaneseq
      %v441 = vshrl.u32 %v440, 7
      %v442 = vsub.s32 0, %v441
      %v443 = vrot.slane %v438, %v442
      %v449 = vcombine.low %v422, %v424
      %v450 = vcombine.low %v426, %v428
      %v452 = vunpack.c.l.s4 1983009808
      %v453 = vunpack.c.0.s8 %v452
      %v454 = vlaneseq
      %v455 = vshrl.u32 %v454, 7
      %v456 = vsub.s32 %v453, %v455
      %v457 = vrot.slane %v449, %v456
      %v459 = vunpack.c.l.s4 1983009808
      %v460 = vunpack.c.0.s8 %v459
      %v461 = vlaneseq
      %v462 = vshrl.u32 %v461, 7
      %v463 = vsub.s32 %v460, %v462
      %v464 = vrot.slane %v450, %v463
      %v465 = vcombine.low %v457, %v464
      %v475 = vunpack.c.l.b16 %v429
      %v476 = vunpack.c.l.b16 %v430
      %v477 = vunpack.c.l.b16 %v431
      %v478 = vunpack.c.l.b16 %v432
      %v479 = vunpack.c.l.b16 %v433
      %v480 = vunpack.c.l.b16 %v434
      %v481 = vunpack.c.l.b16 %v435
      %v482 = vunpack.c.l.b16 %v436
      %v483 = vunpack.c.l.b16 %v437
      %v484 = vpack.c.b16 %v476, %v475
      %v485 = vpack.c.b16 %v478, %v477
      %v486 = vpack.c.b16 %v480, %v479
      %v487 = vpack.c.b16 %v482, %v481
      %v488 = vpack.c.b16 %v483, %v483
      %vm493 = vcmask 588800
      %v495 = vsel %vm493, %v465, 0
      %vm497 = vcmask 1043456
      %v499 = vsel %vm497, %v488, 0
      %501 = vmatprep.subr.bf16.mxu0 0
      %502 = vmatpush1.bf16.msra.mxu0 %v484
      %503 = vmatprep.subr.bf16.mxu0 0
      %504 = vmatpush1.bf16.msra.mxu0 %v485
      %505 = vmatprep.subr.bf16.mxu0 0
      %506 = vmatpush1.bf16.msra.mxu0 %v486
      %507 = vmatprep.subr.bf16.mxu0 0
      %508 = vmatpush1.bf16.msra.mxu0 %v487
      %509 = vmatprep.subr.bf16.mxu0 0
      %510 = vmatpush1.bf16.msra.mxu0 %v499
      %511 = vmatprep.subr.bf16.mxu0 0
      %512 = vmatpush1.bf16.msra.mxu0 0
      %513 = vmatprep.subr.bf16.mxu0 0
      %514 = vmatpush1.bf16.msra.mxu0 0
      %515 = vmatprep.subr.bf16.mxu0 0
      %516 = vmatpush1.bf16.msra.mxu0 0
      %517 = vmatprep.subr.bf16.mxu0 0
      %518 = vmatpush1.bf16.msra.mxu0 0
      %519 = vmatprep.subr.bf16.mxu0 0
      %520 = vmatpush1.bf16.msra.mxu0 0
      %521 = vmatprep.subr.bf16.mxu0 0
      %522 = vmatpush1.bf16.msra.mxu0 0
      %523 = vmatprep.subr.bf16.mxu0 0
      %524 = vmatpush1.bf16.msra.mxu0 0
      %525 = vmatprep.subr.bf16.mxu0 0
      %526 = vmatpush1.bf16.msra.mxu0 0
      %527 = vmatprep.subr.bf16.mxu0 0
      %528 = vmatpush1.bf16.msra.mxu0 0
      %529 = vmatprep.subr.bf16.mxu0 0
      %530 = vmatpush1.bf16.msra.mxu0 0
      %531 = vmatprep.subr.bf16.mxu0 0
      %532 = vmatpush1.bf16.msra.mxu0 0
      %533 = vmatprep.mubr.bf16.mxu0 0
      %534 = vmatmul.mubr.bf16.gmra.mrb[0].mxu0 %v495
      %v535 = vpop.f32.mrb[0].mxu0
      %v536 = vadd.f32 %v443, %v535
      %v537 = vpop.f32.mrb[0].mxu0
      %v538 = vpop.f32.mrb[0].mxu0
      %v539 = vadd.f32 %v443, %v538
      %v540 = vpop.f32.mrb[0].mxu0
      %541 = vdwg.mxu0
      %v542 = vmax.f32 %v536, 0.0
      %v543 = vmax.f32 %v539, 0.0
      %v546 = vcombine.high %v542, %v542
      %v547 = vcombine.high %v543, %v543
      %v550 = vpack.c.bf16 %v542, %v542
      %v551 = vpack.c.bf16 %v546, %v546
      %v552 = vpack.c.bf16 %v543, %v543
      %v553 = vpack.c.bf16 %v547, %v547
      %vm554 = vcmask 123904
      %555 = vst.msk [vmem:[%s206] sm:$0x3] %vm554, %v550
      %556 = vst.msk [vmem:[%s206 + $0x2] sm:$0x3] %vm554, %v551
      %557 = vst.msk [vmem:[%s206 + $0x4] sm:$0x3] %vm554, %v552
      %558 = vst.msk [vmem:[%s206 + $0x6] sm:$0x3] %vm554, %v553
      %s559 = smul.u32 4, %s19
      %p560 = scmp.lt.s32.totalorder %s18, 1
      %s561 = scalar_select %p560, %s18, 1
      %p562 = scmp.lt.s32.totalorder %s559, 3
      %s563 = scalar_select %p562, %s559, 3
      %s564 = smul.addr %s561, 4
      %s565 = sadd.s32 %s563, %s564
      %s566 = smul.addr %s565, 2
      %s567 = scalar_lea.vmem %s3, %s566
      // Predicated region
      $region33: #{backbone_base_forward.5} parent=31 // pred_check
        %p568 = pneg %p116
      $region34: #{backbone_base_forward.5} parent=31 // pred_check_branch
        %570 = sbr.rel (%p568) target = $region36
      $region35: #{backbone_base_forward.5} parent=31 // pred_region
        %s571 = smul.u32 4, %s19
      $region36: #{backbone_base_forward.5} parent=31 // pred_fallthru
        _
    $region32: #{backbone_base_forward.5} parent=5 // pred_fallthru
      _
    %p572 = scmp.le.s32.totalorder 2, %s9
    // Predicated region
    $region37: #{backbone_base_forward.5} parent=5 // pred_check
      %p573 = pneg %p572
    $region38: #{backbone_base_forward.5} parent=5 // pred_check_branch
      %575 = sbr.rel (%p573) target = $region40
    $region39: #{backbone_base_forward.5} parent=5 // pred_region
      %s576 = ssub.s32 %s9, 2
      // Predicated region
      $region41: #{backbone_base_forward.5} parent=39 // pred_check
        %p577 = pneg %p122
      $region42: #{backbone_base_forward.5} parent=39 // pred_check_branch
        %579 = sbr.rel (%p577) target = $region44
      $region43: #{backbone_base_forward.5} parent=39 // pred_region
        %s580 = smul.u32 4, %s21
        %p581 = scmp.lt.s32.totalorder %s20, 1
        %s582 = scalar_select %p581, %s20, 1
        %p583 = scmp.lt.s32.totalorder %s580, 3
        %s584 = scalar_select %p583, %s580, 3
        %s585 = smul.addr %s582, 4
        %s586 = sadd.s32 %s584, %s585
        %s587 = smul.addr %s586, 2
        %s588 = scalar_lea.vmem %s3, %s587
      $region44: #{backbone_base_forward.5} parent=39 // pred_fallthru
        _
    $region40: #{backbone_base_forward.5} parent=5 // pred_fallthru
      _
  $region6: #{backbone_base_forward.5} parent=0 // loop_footer
    %s13 = sadd.s32 1, %s9
  $region7: #{backbone_base_forward.5} parent=0 // loop_footer_branch
    %8 = sbr.rel target = $region3
  $region8: #{backbone_base_forward.5} parent=0 // loop_exit
    _

// kernel: backbone_base_forward.6
$region0: #{backbone_base_forward.6}
  #allocation0 [shape = 'u32[]', space=smem, size = 0x4, offset = 0x4, fixed_abs, tag = 'smem constant byte address 0x4 - core index']
  #allocation1 [shape = 'u32[144,128]{1,0:T(1,128)}', space=vmem, size = 0x12000, scoped, tag = 'internal scratch']
  %s0 = inlined_call_operand.vmem [shape: bf16[2,1,3,3,64], index: 0, kind: input, shape index: {}]
  %s1 = inlined_call_operand.vmem [shape: bf16[144,32], index: 1, kind: input, shape index: {}]
  %s2 = inlined_call_operand.vmem [shape: f32[1,32], index: 2, kind: input, shape index: {}]
  %s3 = inlined_call_operand.vmem [shape: bf16[2,2,2,32], index: 3, kind: output, shape index: {}]
  %s4 = sld [smem:[#allocation0]]
  $region45: #{backbone_base_forward.6} parent=0
    _
  %s6 = ssub.s32 1, %s4
  %s7 = scalar_select 0, %s6, %s4
  loop: start=0, step=1, limit=4
  $region2: #{backbone_base_forward.6} parent=0 // loop_pre_header
    _
  $region3: #{backbone_base_forward.6} parent=0 // loop_header
    %s9 = sphi 0, %s13
    %p10 = scmp.ge.s32.totalorder %s9, 4
    %s16 = sphi 0, %s28
    %s17 = sphi 0, %s24
    %s18 = sphi 0, %s16
    %s19 = sphi 0, %s17
    %s20 = sphi 0, %s18
    %s21 = sphi 0, %s19
    %s33 = sphi 0, %s35
    %s36 = sphi 0, %s33
    %s37 = sphi 0, %s36
    %s53 = sphi 0, %s37
    %s57 = sphi 0, %s57
    %s59 = sphi 0, %s57
    %s60 = sphi 0, %s59
    %s74 = sphi 0, %s60
    %s78 = sphi 0, %s78
    %s80 = sphi 0, %s78
    %s81 = sphi 0, %s80
    %s95 = sphi 0, %s81
    %s103 = sphi 0, %s105
    %s106 = sphi 0, %s103
    %s107 = sphi 0, %s106
    %s123 = sphi 0, %s107
  $region4: #{backbone_base_forward.6} parent=0 // loop_header_branch
    %12 = sbr.rel (%p10) target = $region8
  $region5: #{backbone_base_forward.6} parent=0 // loop_body
    %s14 = ssub.s32 %s9, 1
    %s15 = ssub.s32 %s9, 2
    %s22 = sadd.s32 1, %s17
    %p23 = scmp.ge.s32.totalorder %s22, 1
    %s24 = scalar_select %p23, 0, %s22
    %s25 = sadd.s32 1, %s16
    %s26 = scalar_select %p23, %s25, %s16
    %p27 = scmp.ge.s32.totalorder %s26, 2
    %s28 = scalar_select %p27, 0, %s26
    %s29 = ssub.s32 %s16, %s28
    %s30 = ssub.s32 %s17, %s24
    %s31 = sor.u32 %s29, %s30
    %p32 = scmp.eq.s32.totalorder %s31, 0
    %s34 = sadd.s32 %s33, 1
    %s35 = scalar_select %p32, %s33, %s34
    %p38 = pneg %p32
    %p39 = scmp.eq.s32.totalorder %s9, 1
    %p40 = por %p38, %p39
    %p41 = scmp.ne.s32.totalorder %s33, %s36
    %p42 = scmp.eq.s32.totalorder %s9, 0
    %p43 = por %p41, %p42
    %p44 = scmp.ne.s32.totalorder %s33, %s36
    %p45 = scmp.eq.s32.totalorder %s14, 1
    %p46 = por %p44, %p45
    %p47 = scmp.ne.s32.totalorder %s36, %s37
    %p48 = scmp.eq.s32.totalorder %s14, 0
    %p49 = por %p47, %p48
    %p50 = scmp.ne.s32.totalorder %s36, %s37
    %p51 = scmp.eq.s32.totalorder %s15, 1
    %p52 = por %p50, %p51
    %p54 = scmp.ne.s32.totalorder %s37, %s53
    %p55 = scmp.eq.s32.totalorder %s15, 0
    %p56 = por %p54, %p55
    %s58 = sadd.s32 %s57, 1
    %p61 = scmp.eq.s32.totalorder %s9, 1
    %p62 = scmp.ne.s32.totalorder %s57, %s59
    %p63 = scmp.eq.s32.totalorder %s9, 0
    %p64 = por %p62, %p63
    %p65 = scmp.ne.s32.totalorder %s57, %s59
    %p66 = scmp.eq.s32.totalorder %s14, 1
    %p67 = por %p65, %p66
    %p68 = scmp.ne.s32.totalorder %s59, %s60
    %p69 = scmp.eq.s32.totalorder %s14, 0
    %p70 = por %p68, %p69
    %p71 = scmp.ne.s32.totalorder %s59, %s60
    %p72 = scmp.eq.s32.totalorder %s15, 1
    %p73 = por %p71, %p72
    %p75 = scmp.ne.s32.totalorder %s60, %s74
    %p76 = scmp.eq.s32.totalorder %s15, 0
    %p77 = por %p75, %p76
    %s79 = sadd.s32 %s78, 1
    %p82 = scmp.eq.s32.totalorder %s9, 1
    %p83 = scmp.ne.s32.totalorder %s78, %s80
    %p84 = scmp.eq.s32.totalorder %s9, 0
    %p85 = por %p83, %p84
    %p86 = scmp.ne.s32.totalorder %s78, %s80
    %p87 = scmp.eq.s32.totalorder %s14, 1
    %p88 = por %p86, %p87
    %p89 = scmp.ne.s32.totalorder %s80, %s81
    %p90 = scmp.eq.s32.totalorder %s14, 0
    %p91 = por %p89, %p90
    %p92 = scmp.ne.s32.totalorder %s80, %s81
    %p93 = scmp.eq.s32.totalorder %s15, 1
    %p94 = por %p92, %p93
    %p96 = scmp.ne.s32.totalorder %s81, %s95
    %p97 = scmp.eq.s32.totalorder %s15, 0
    %p98 = por %p96, %p97
    %s99 = ssub.s32 %s16, %s28
    %s100 = ssub.s32 %s17, %s24
    %s101 = sor.u32 %s99, %s100
    %p102 = scmp.eq.s32.totalorder %s101, 0
    %s104 = sadd.s32 %s103, 1
    %s105 = scalar_select %p102, %s103, %s104
    %p108 = pneg %p102
    %p109 = scmp.eq.s32.totalorder %s9, 1
    %p110 = por %p108, %p109
    %p111 = scmp.ne.s32.totalorder %s103, %s106
    %p112 = scmp.eq.s32.totalorder %s9, 0
    %p113 = por %p111, %p112
    %p114 = scmp.ne.s32.totalorder %s103, %s106
    %p115 = scmp.eq.s32.totalorder %s14, 1
    %p116 = por %p114, %p115
    %p117 = scmp.ne.s32.totalorder %s106, %s107
    %p118 = scmp.eq.s32.totalorder %s14, 0
    %p119 = por %p117, %p118
    %p120 = scmp.ne.s32.totalorder %s106, %s107
    %p121 = scmp.eq.s32.totalorder %s15, 1
    %p122 = por %p120, %p121
    %p124 = scmp.ne.s32.totalorder %s107, %s123
    %p125 = scmp.eq.s32.totalorder %s15, 0
    %p126 = por %p124, %p125
    %p127 = scmp.le.s32.totalorder 1, %s9
    %p128 = scmp.lt.s32.totalorder %s9, 3
    %p129 = pnand %p127, %p128
    %p130 = pneg %p129
    // Predicated region
    $region9: #{backbone_base_forward.6} parent=5 // pred_check
      _
    $region10: #{backbone_base_forward.6} parent=5 // pred_check_branch
      %132 = sbr.rel (%p129) target = $region12
    $region11: #{backbone_base_forward.6} parent=5 // pred_region
      %s133 = ssub.s32 %s9, 1
      // Predicated region
      $region13: #{backbone_base_forward.6} parent=11 // pred_check
        %p134 = pneg %p70
      $region14: #{backbone_base_forward.6} parent=11 // pred_check_branch
        %136 = sbr.rel (%p134) target = $region16
      $region15: #{backbone_base_forward.6} parent=11 // pred_region
        _
      $region16: #{backbone_base_forward.6} parent=11 // pred_fallthru
        _
      // Predicated region
      $region17: #{backbone_base_forward.6} parent=11 // pred_check
        %p137 = pneg %p91
      $region18: #{backbone_base_forward.6} parent=11 // pred_check_branch
        %139 = sbr.rel (%p137) target = $region20
      $region19: #{backbone_base_forward.6} parent=11 // pred_region
        _
      $region20: #{backbone_base_forward.6} parent=11 // pred_fallthru
        _
    $region12: #{backbone_base_forward.6} parent=5 // pred_fallthru
      _
    %p140 = scmp.lt.s32.totalorder %s9, 2
    // Predicated region
    $region21: #{backbone_base_forward.6} parent=5 // pred_check
      %p141 = pneg %p140
    $region22: #{backbone_base_forward.6} parent=5 // pred_check_branch
      %143 = sbr.rel (%p141) target = $region24
    $region23: #{backbone_base_forward.6} parent=5 // pred_region
      // Predicated region
      $region25: #{backbone_base_forward.6} parent=23 // pred_check
        %p144 = pneg %p43
      $region26: #{backbone_base_forward.6} parent=23 // pred_check_branch
        %146 = sbr.rel (%p144) target = $region28
      $region27: #{backbone_base_forward.6} parent=23 // pred_region
        %p147 = scmp.lt.s32.totalorder %s16, 1
        %s148 = scalar_select %p147, %s16, 1
        %p149 = scmp.lt.s32.totalorder %s17, 0
        %s150 = scalar_select %p149, %s17, 0
        %s151 = smul.addr %s150, 3
        %s152 = smul.addr %s148, 3
        %s153 = sadd.s32 %s151, %s152
        %s154 = smul.addr %s153, 2
        %s155 = scalar_lea.vmem %s0, %s154
      $region28: #{backbone_base_forward.6} parent=23 // pred_fallthru
        _
    $region24: #{backbone_base_forward.6} parent=5 // pred_fallthru
      _
    %p156 = scmp.le.s32.totalorder 1, %s9
    %p157 = scmp.lt.s32.totalorder %s9, 3
    %p158 = pnand %p156, %p157
    %p159 = pneg %p158
    // Predicated region
    $region29: #{backbone_base_forward.6} parent=5 // pred_check
      _
    $region30: #{backbone_base_forward.6} parent=5 // pred_check_branch
      %161 = sbr.rel (%p158) target = $region32
    $region31: #{backbone_base_forward.6} parent=5 // pred_region
      %s162 = ssub.s32 %s9, 1
      %p163 = scmp.lt.s32.totalorder %s18, 1
      %s164 = scalar_select %p163, %s18, 1
      %p165 = scmp.lt.s32.totalorder %s19, 0
      %s166 = scalar_select %p165, %s19, 0
      %s167 = smul.addr %s166, 3
      %s168 = smul.addr %s164, 3
      %s169 = sadd.s32 %s167, %s168
      %s170 = smul.addr %s169, 2
      %s171 = scalar_lea.vmem %s0, %s170
      %p172 = pneg %p49
      %p173 = pneg %p46
      %p174 = pneg %p70
      %p175 = pneg %p67
      %p176 = pneg %p91
      %p177 = pneg %p88
      %p178 = pneg %p119
      %p179 = pneg %p116
      %s180 = smul.u32 2, %s19
      %p181 = scmp.lt.s32.totalorder %s18, 1
      %s182 = scalar_select %p181, %s18, 1
      %p183 = scmp.lt.s32.totalorder %s180, 1
      %s184 = scalar_select %p183, %s180, 1
      %s185 = smul.addr %s182, 2
      %s186 = sadd.s32 %s184, %s185
      %s187 = scalar_lea.vmem %s3, %s186
      %p188 = scmp.lt.s32.totalorder %s18, 1
      %s189 = scalar_select %p188, %s18, 1
      %p190 = scmp.lt.s32.totalorder %s19, 0
      %s191 = scalar_select %p190, %s19, 0
      %s192 = smul.addr %s191, 3
      %s193 = smul.addr %s189, 3
      %s194 = sadd.s32 %s192, %s193
      %s195 = smul.addr %s194, 2
      %s196 = scalar_lea.vmem %s0, %s195
      %s197 = smul.u32 2, %s19
      %p198 = scmp.lt.s32.totalorder %s18, 1
      %s199 = scalar_select %p198, %s18, 1
      %p200 = scmp.lt.s32.totalorder %s197, 1
      %s201 = scalar_select %p200, %s197, 1
      %s202 = smul.addr %s199, 2
      %s203 = sadd.s32 %s201, %s202
      %s204 = scalar_lea.vmem %s3, %s203
      %s205 = smul.u32 2, %s19
      %v207 = vld [vmem:[%s196] sm:$0x1]
      %v208 = vld [vmem:[%s196 + $0x2] sm:$0x1]
      %v209 = vld [vmem:[%s196] sm:$0x3]
      %v210 = vld [vmem:[%s196 + $0x2] sm:$0x3]
      %s211 = scalar_lea.vmem %s196, 2
      %v212 = vld [vmem:[%s211] sm:$0x1]
      %v213 = vld [vmem:[%s211 + $0x2] sm:$0x1]
      %v214 = vld [vmem:[%s211] sm:$0x3]
      %v215 = vld [vmem:[%s211 + $0x2] sm:$0x3]
      %v219 = vunpack.c.l.s4 1983009808
      %v220 = vunpack.c.0.s8 %v219
      %v221 = vlaneseq
      %v222 = vshrl.u32 %v221, 7
      %v223 = vsub.s32 %v220, %v222
      %v224 = vrot.slane %v209, %v223
      %v226 = vunpack.c.l.s4 1983009808
      %v227 = vunpack.c.0.s8 %v226
      %v228 = vlaneseq
      %v229 = vshrl.u32 %v228, 7
      %v230 = vsub.s32 %v227, %v229
      %v231 = vrot.slane %v210, %v230
      %v233 = vshrl.u32 %v224, 16
      %v235 = vshll.u32 %v224, 16
      %v237 = vrot.slane %v235, 1
      %v238 = vor.u32 %v233, %v237
      %v240 = vshrl.u32 %v231, 16
      %v242 = vshll.u32 %v231, 16
      %v244 = vrot.slane %v242, 1
      %v245 = vor.u32 %v240, %v244
      %246 = vrot.lane.b32.xlu0 %v238, 32
      %v247 = vpop.permute.xlu0 %246
      %248 = vrot.lane.b32.xlu0 %v245, 32
      %v249 = vpop.permute.xlu0 %248
      %v253 = vunpack.c.l.s4 1983009808
      %v254 = vunpack.c.0.s8 %v253
      %v255 = vlaneseq
      %v256 = vshrl.u32 %v255, 7
      %v257 = vsub.s32 %v254, %v256
      %v258 = vrot.slane %v207, %v257
      %v260 = vunpack.c.l.s4 1983009808
      %v261 = vunpack.c.0.s8 %v260
      %v262 = vlaneseq
      %v263 = vshrl.u32 %v262, 7
      %v264 = vsub.s32 %v261, %v263
      %v265 = vrot.slane %v208, %v264
      %266 = vrot.lane.b32.xlu0 %v258, 16
      %v267 = vpop.permute.xlu0 %266
      %268 = vrot.lane.b32.xlu0 %v265, 16
      %v269 = vpop.permute.xlu0 %268
      %270 = vrot.lane.b32.xlu0 %v238, 48
      %v271 = vpop.permute.xlu0 %270
      %272 = vrot.lane.b32.xlu0 %v245, 48
      %v273 = vpop.permute.xlu0 %272
      %v277 = vunpack.c.l.s4 1983009808
      %v278 = vunpack.c.0.s8 %v277
      %v279 = vlaneseq
      %v280 = vshrl.u32 %v279, 7
      %v281 = vsub.s32 %v278, %v280
      %v282 = vrot.slane %v212, %v281
      %v284 = vunpack.c.l.s4 1983009808
      %v285 = vunpack.c.0.s8 %v284
      %v286 = vlaneseq
      %v287 = vshrl.u32 %v286, 7
      %v288 = vsub.s32 %v285, %v287
      %v289 = vrot.slane %v213, %v288
      %290 = vrot.lane.b32.xlu0 %v282, 96
      %v291 = vpop.permute.xlu0 %290
      %292 = vrot.lane.b32.xlu0 %v289, 96
      %v293 = vpop.permute.xlu0 %292
      %v297 = vunpack.c.l.s4 1983009808
      %v298 = vunpack.c.0.s8 %v297
      %v299 = vlaneseq
      %v300 = vshrl.u32 %v299, 7
      %v301 = vsub.s32 %v298, %v300
      %v302 = vrot.slane %v214, %v301
      %v304 = vunpack.c.l.s4 1983009808
      %v305 = vunpack.c.0.s8 %v304
      %v306 = vlaneseq
      %v307 = vshrl.u32 %v306, 7
      %v308 = vsub.s32 %v305, %v307
      %v309 = vrot.slane %v215, %v308
      %v311 = vshrl.u32 %v302, 16
      %v313 = vshll.u32 %v302, 16
      %v315 = vrot.slane %v313, 1
      %v316 = vor.u32 %v311, %v315
      %v318 = vshrl.u32 %v309, 16
      %v320 = vshll.u32 %v309, 16
      %v322 = vrot.slane %v320, 1
      %v323 = vor.u32 %v318, %v322
      %vm324 = vcmask 130048
      %vm327 = vcmask 261120
      %v329 = vsel %vm327, %v207, %v247
      %v331 = vsel %vm327, %v208, %v249
      %vm332 = vcmask 392192
      %v334 = vsel %vm332, %v329, %v267
      %v336 = vsel %vm332, %v331, %v269
      %vm337 = vcmask 523264
      %v338 = vsel %vm337, %v334, %v267
      %v339 = vsel %vm337, %v336, %v269
      %vm340 = vcmask 654336
      %v342 = vsel %vm340, %v338, %v271
      %v344 = vsel %vm340, %v339, %v273
      %vm345 = vcmask 785408
      %v347 = vsel %vm345, %v342, %v291
      %v349 = vsel %vm345, %v344, %v293
      %vm350 = vcmask 916480
      %v351 = vsel %vm350, %v347, %v291
      %v352 = vsel %vm350, %v349, %v293
      %v355 = vcombine.low %v351, %v316
      %v357 = vunpack.c.l.s4 1966171168
      %v358 = vunpack.c.0.s8 %v357
      %v359 = vlaneseq
      %v360 = vshrl.u32 %v359, 7
      %v361 = vsub.s32 %v358, %v360
      %v362 = vrot.slane %v355, %v361
      %v364 = vunpack.c.l.s4 1966171168
      %v365 = vunpack.c.0.s8 %v364
      %v366 = vlaneseq
      %v367 = vshrl.u32 %v366, 7
      %v368 = vsub.s32 %v365, %v367
      %v369 = vrot.slane %v362, %v368
      %v370 = vcombine.low %v352, %v323
      %v372 = vunpack.c.l.s4 1966171168
      %v373 = vunpack.c.0.s8 %v372
      %v374 = vlaneseq
      %v375 = vshrl.u32 %v374, 7
      %v376 = vsub.s32 %v373, %v375
      %v377 = vrot.slane %v370, %v376
      %v379 = vunpack.c.l.s4 1966171168
      %v380 = vunpack.c.0.s8 %v379
      %v381 = vlaneseq
      %v382 = vshrl.u32 %v381, 7
      %v383 = vsub.s32 %v380, %v382
      %v384 = vrot.slane %v377, %v383
      %v385 = vld [vmem:[%s1] sm:$0xf]
      %v386 = vld [vmem:[%s1 + $0x4] sm:$0xf]
      %v387 = vld [vmem:[%s1 + $0x8] sm:$0xf]
      %v388 = vld [vmem:[%s1 + $0xc] sm:$0xf]
      %v389 = vld [vmem:[%s1 + $0x10] sm:$0xf]
      %v390 = vld [vmem:[%s1 + $0x14] sm:$0xf]
      %v391 = vld [vmem:[%s1 + $0x18] sm:$0xf]
      %v392 = vld [vmem:[%s1 + $0x1c] sm:$0xf]
      %v393 = vld [vmem:[%s1 + $0x20] sm:$0xf]
      %v394 = vld [vmem:[%s1 + $0x24] sm:$0xf]
      %v395 = vld [vmem:[%s1 + $0x28] sm:$0xf]
      %v396 = vld [vmem:[%s1 + $0x2c] sm:$0xf]
      %v397 = vld [vmem:[%s1 + $0x30] sm:$0xf]
      %v398 = vld [vmem:[%s1 + $0x34] sm:$0xf]
      %v399 = vld [vmem:[%s1 + $0x38] sm:$0xf]
      %v400 = vld [vmem:[%s1 + $0x3c] sm:$0xf]
      %v401 = vld [vmem:[%s1 + $0x40] sm:$0xf]
      %v402 = vld [vmem:[%s1 + $0x44] sm:$0xf]
      %v403 = vld [vmem:[%s2] sm:$0x1]
      %v405 = vlaneseq
      %v406 = vshrl.u32 %v405, 7
      %v407 = vsub.s32 0, %v406
      %v408 = vrot.slane %v403, %v407
      %v410 = vcombine.low %v369, %v384
      %v412 = vunpack.c.l.s4 1966171168
      %v413 = vunpack.c.0.s8 %v412
      %v414 = vlaneseq
      %v415 = vshrl.u32 %v414, 7
      %v416 = vsub.s32 %v413, %v415
      %v417 = vrot.slane %v410, %v416
      %v418 = vcombine.high %v417, %v417
      %v420 = vunpack.c.l.s4 1966171168
      %v421 = vunpack.c.0.s8 %v420
      %v422 = vlaneseq
      %v423 = vshrl.u32 %v422, 7
      %v424 = vsub.s32 %v421, %v423
      %v425 = vrot.slane %v417, %v424
      %v427 = vunpack.c.l.s4 1966171168
      %v428 = vunpack.c.0.s8 %v427
      %v429 = vlaneseq
      %v430 = vshrl.u32 %v429, 7
      %v431 = vsub.s32 %v428, %v430
      %v432 = vrot.slane %v418, %v431
      %v452 = vunpack.c.l.b16 %v385
      %v453 = vunpack.c.l.b16 %v386
      %v454 = vunpack.c.l.b16 %v387
      %v455 = vunpack.c.l.b16 %v388
      %v456 = vunpack.c.l.b16 %v389
      %v457 = vunpack.c.l.b16 %v390
      %v458 = vunpack.c.l.b16 %v391
      %v459 = vunpack.c.l.b16 %v392
      %v460 = vunpack.c.l.b16 %v393
      %v461 = vunpack.c.l.b16 %v394
      %v462 = vunpack.c.l.b16 %v395
      %v463 = vunpack.c.l.b16 %v396
      %v464 = vunpack.c.l.b16 %v397
      %v465 = vunpack.c.l.b16 %v398
      %v466 = vunpack.c.l.b16 %v399
      %v467 = vunpack.c.l.b16 %v400
      %v468 = vunpack.c.l.b16 %v401
      %v469 = vunpack.c.l.b16 %v402
      %v470 = vpack.c.b16 %v453, %v452
      %v471 = vpack.c.b16 %v455, %v454
      %v472 = vpack.c.b16 %v457, %v456
      %v473 = vpack.c.b16 %v459, %v458
      %v474 = vpack.c.b16 %v461, %v460
      %v475 = vpack.c.b16 %v463, %v462
      %v476 = vpack.c.b16 %v465, %v464
      %v477 = vpack.c.b16 %v467, %v466
      %v478 = vpack.c.b16 %v469, %v468
      %v489 = vsel %vm324, %v432, 0
      %491 = vmatprep.subr.bf16.mxu0 0
      %492 = vmatpush1.bf16.msra.mxu0 %v470
      %493 = vmatprep.subr.bf16.mxu0 0
      %494 = vmatpush1.bf16.msra.mxu0 %v471
      %495 = vmatprep.subr.bf16.mxu0 0
      %496 = vmatpush1.bf16.msra.mxu0 %v472
      %497 = vmatprep.subr.bf16.mxu0 0
      %498 = vmatpush1.bf16.msra.mxu0 %v473
      %499 = vmatprep.subr.bf16.mxu0 0
      %500 = vmatpush1.bf16.msra.mxu0 %v474
      %501 = vmatprep.subr.bf16.mxu0 0
      %502 = vmatpush1.bf16.msra.mxu0 %v475
      %503 = vmatprep.subr.bf16.mxu0 0
      %504 = vmatpush1.bf16.msra.mxu0 %v476
      %505 = vmatprep.subr.bf16.mxu0 0
      %506 = vmatpush1.bf16.msra.mxu0 %v477
      %507 = vmatprep.subr.bf16.mxu0 0
      %508 = vmatpush1.bf16.msra.mxu0 %v478
      %509 = vmatprep.subr.bf16.mxu0 0
      %510 = vmatpush1.bf16.msra.mxu0 0
      %511 = vmatprep.subr.bf16.mxu0 0
      %512 = vmatpush1.bf16.msra.mxu0 0
      %513 = vmatprep.subr.bf16.mxu0 0
      %514 = vmatpush1.bf16.msra.mxu0 0
      %515 = vmatprep.subr.bf16.mxu0 0
      %516 = vmatpush1.bf16.msra.mxu0 0
      %517 = vmatprep.subr.bf16.mxu0 0
      %518 = vmatpush1.bf16.msra.mxu0 0
      %519 = vmatprep.subr.bf16.mxu0 0
      %520 = vmatpush1.bf16.msra.mxu0 0
      %521 = vmatprep.subr.bf16.mxu0 0
      %522 = vmatpush1.bf16.msra.mxu0 0
      %523 = vmatprep.mubr.bf16.mxu0 %v489
      %524 = vmatmul.mubr.bf16.gmra.mrb[0].mxu0 %v425
      %v525 = vpop.f32.mrb[0].mxu0
      %v526 = vadd.f32 %v408, %v525
      %v527 = vpop.f32.mrb[0].mxu0
      %v528 = vpop.f32.mrb[0].mxu0
      %v529 = vpop.f32.mrb[0].mxu0
      %530 = vdwg.mxu0
      %v531 = vmax.f32 %v526, 0.0
      %v534 = vunpack.c.l.s4 1983009808
      %v535 = vunpack.c.0.s8 %v534
      %v536 = vlaneseq
      %v537 = vshrl.u32 %v536, 7
      %v538 = vsub.s32 %v535, %v537
      %v539 = vrot.slane %v531, %v538
      %v540 = vcombine.high %v539, %v539
      %v543 = vpack.c.bf16 %v539, %v539
      %v544 = vpack.c.bf16 %v540, %v540
      %vm545 = vcmask 253952
      %546 = vst.msk [vmem:[%s204] sm:$0x1] %vm545, %v543
      %547 = vst.msk [vmem:[%s204 + $0x1] sm:$0x1] %vm545, %v544
      %s548 = smul.u32 2, %s19
      %p549 = scmp.lt.s32.totalorder %s18, 1
      %s550 = scalar_select %p549, %s18, 1
      %p551 = scmp.lt.s32.totalorder %s548, 1
      %s552 = scalar_select %p551, %s548, 1
      %s553 = smul.addr %s550, 2
      %s554 = sadd.s32 %s552, %s553
      %s555 = scalar_lea.vmem %s3, %s554
      // Predicated region
      $region33: #{backbone_base_forward.6} parent=31 // pred_check
        %p556 = pneg %p116
      $region34: #{backbone_base_forward.6} parent=31 // pred_check_branch
        %558 = sbr.rel (%p556) target = $region36
      $region35: #{backbone_base_forward.6} parent=31 // pred_region
        %s559 = smul.u32 2, %s19
      $region36: #{backbone_base_forward.6} parent=31 // pred_fallthru
        _
    $region32: #{backbone_base_forward.6} parent=5 // pred_fallthru
      _
    %p560 = scmp.le.s32.totalorder 2, %s9
    // Predicated region
    $region37: #{backbone_base_forward.6} parent=5 // pred_check
      %p561 = pneg %p560
    $region38: #{backbone_base_forward.6} parent=5 // pred_check_branch
      %563 = sbr.rel (%p561) target = $region40
    $region39: #{backbone_base_forward.6} parent=5 // pred_region
      %s564 = ssub.s32 %s9, 2
      // Predicated region
      $region41: #{backbone_base_forward.6} parent=39 // pred_check
        %p565 = pneg %p122
      $region42: #{backbone_base_forward.6} parent=39 // pred_check_branch
        %567 = sbr.rel (%p565) target = $region44
      $region43: #{backbone_base_forward.6} parent=39 // pred_region
        %s568 = smul.u32 2, %s21
        %p569 = scmp.lt.s32.totalorder %s20, 1
        %s570 = scalar_select %p569, %s20, 1
        %p571 = scmp.lt.s32.totalorder %s568, 1
        %s572 = scalar_select %p571, %s568, 1
        %s573 = smul.addr %s570, 2
        %s574 = sadd.s32 %s572, %s573
        %s575 = scalar_lea.vmem %s3, %s574
      $region44: #{backbone_base_forward.6} parent=39 // pred_fallthru
        _
    $region40: #{backbone_base_forward.6} parent=5 // pred_fallthru
      _
  $region6: #{backbone_base_forward.6} parent=0 // loop_footer
    %s13 = sadd.s32 1, %s9
  $region7: #{backbone_base_forward.6} parent=0 // loop_footer_branch
    %8 = sbr.rel target = $region3
  $region8: #{backbone_base_forward.6} parent=0 // loop_exit
    _

// kernel: backbone_base_forward.7
$region0: #{backbone_base_forward.7}
  #allocation0 [shape = 'u32[]', space=smem, size = 0x4, offset = 0x4, fixed_abs, tag = 'smem constant byte address 0x4 - core index']
  #allocation1 [shape = 'u32[144,128]{1,0:T(1,128)}', space=vmem, size = 0x12000, scoped, tag = 'internal scratch']
  %s0 = inlined_call_operand.vmem [shape: bf16[2,1,2,2,128], index: 0, kind: input, shape index: {}]
  %s1 = inlined_call_operand.vmem [shape: bf16[288,32], index: 1, kind: input, shape index: {}]
  %s2 = inlined_call_operand.vmem [shape: f32[1,32], index: 2, kind: input, shape index: {}]
  %s3 = inlined_call_operand.vmem [shape: bf16[2,1,1,32], index: 3, kind: output, shape index: {}]
  %s4 = sld [smem:[#allocation0]]
  $region45: #{backbone_base_forward.7} parent=0
    _
  %s6 = ssub.s32 1, %s4
  %s7 = scalar_select 0, %s6, %s4
  loop: start=0, step=1, limit=4
  $region2: #{backbone_base_forward.7} parent=0 // loop_pre_header
    _
  $region3: #{backbone_base_forward.7} parent=0 // loop_header
    %s9 = sphi 0, %s13
    %p10 = scmp.ge.s32.totalorder %s9, 4
    %s16 = sphi 0, %s28
    %s17 = sphi 0, %s24
    %s18 = sphi 0, %s16
    %s19 = sphi 0, %s17
    %s20 = sphi 0, %s18
    %s21 = sphi 0, %s19
    %s33 = sphi 0, %s35
    %s36 = sphi 0, %s33
    %s37 = sphi 0, %s36
    %s53 = sphi 0, %s37
    %s57 = sphi 0, %s57
    %s59 = sphi 0, %s57
    %s60 = sphi 0, %s59
    %s74 = sphi 0, %s60
    %s78 = sphi 0, %s78
    %s80 = sphi 0, %s78
    %s81 = sphi 0, %s80
    %s95 = sphi 0, %s81
    %s103 = sphi 0, %s105
    %s106 = sphi 0, %s103
    %s107 = sphi 0, %s106
    %s123 = sphi 0, %s107
  $region4: #{backbone_base_forward.7} parent=0 // loop_header_branch
    %12 = sbr.rel (%p10) target = $region8
  $region5: #{backbone_base_forward.7} parent=0 // loop_body
    %s14 = ssub.s32 %s9, 1
    %s15 = ssub.s32 %s9, 2
    %s22 = sadd.s32 1, %s17
    %p23 = scmp.ge.s32.totalorder %s22, 1
    %s24 = scalar_select %p23, 0, %s22
    %s25 = sadd.s32 1, %s16
    %s26 = scalar_select %p23, %s25, %s16
    %p27 = scmp.ge.s32.totalorder %s26, 2
    %s28 = scalar_select %p27, 0, %s26
    %s29 = ssub.s32 %s16, %s28
    %s30 = ssub.s32 %s17, %s24
    %s31 = sor.u32 %s29, %s30
    %p32 = scmp.eq.s32.totalorder %s31, 0
    %s34 = sadd.s32 %s33, 1
    %s35 = scalar_select %p32, %s33, %s34
    %p38 = pneg %p32
    %p39 = scmp.eq.s32.totalorder %s9, 1
    %p40 = por %p38, %p39
    %p41 = scmp.ne.s32.totalorder %s33, %s36
    %p42 = scmp.eq.s32.totalorder %s9, 0
    %p43 = por %p41, %p42
    %p44 = scmp.ne.s32.totalorder %s33, %s36
    %p45 = scmp.eq.s32.totalorder %s14, 1
    %p46 = por %p44, %p45
    %p47 = scmp.ne.s32.totalorder %s36, %s37
    %p48 = scmp.eq.s32.totalorder %s14, 0
    %p49 = por %p47, %p48
    %p50 = scmp.ne.s32.totalorder %s36, %s37
    %p51 = scmp.eq.s32.totalorder %s15, 1
    %p52 = por %p50, %p51
    %p54 = scmp.ne.s32.totalorder %s37, %s53
    %p55 = scmp.eq.s32.totalorder %s15, 0
    %p56 = por %p54, %p55
    %s58 = sadd.s32 %s57, 1
    %p61 = scmp.eq.s32.totalorder %s9, 1
    %p62 = scmp.ne.s32.totalorder %s57, %s59
    %p63 = scmp.eq.s32.totalorder %s9, 0
    %p64 = por %p62, %p63
    %p65 = scmp.ne.s32.totalorder %s57, %s59
    %p66 = scmp.eq.s32.totalorder %s14, 1
    %p67 = por %p65, %p66
    %p68 = scmp.ne.s32.totalorder %s59, %s60
    %p69 = scmp.eq.s32.totalorder %s14, 0
    %p70 = por %p68, %p69
    %p71 = scmp.ne.s32.totalorder %s59, %s60
    %p72 = scmp.eq.s32.totalorder %s15, 1
    %p73 = por %p71, %p72
    %p75 = scmp.ne.s32.totalorder %s60, %s74
    %p76 = scmp.eq.s32.totalorder %s15, 0
    %p77 = por %p75, %p76
    %s79 = sadd.s32 %s78, 1
    %p82 = scmp.eq.s32.totalorder %s9, 1
    %p83 = scmp.ne.s32.totalorder %s78, %s80
    %p84 = scmp.eq.s32.totalorder %s9, 0
    %p85 = por %p83, %p84
    %p86 = scmp.ne.s32.totalorder %s78, %s80
    %p87 = scmp.eq.s32.totalorder %s14, 1
    %p88 = por %p86, %p87
    %p89 = scmp.ne.s32.totalorder %s80, %s81
    %p90 = scmp.eq.s32.totalorder %s14, 0
    %p91 = por %p89, %p90
    %p92 = scmp.ne.s32.totalorder %s80, %s81
    %p93 = scmp.eq.s32.totalorder %s15, 1
    %p94 = por %p92, %p93
    %p96 = scmp.ne.s32.totalorder %s81, %s95
    %p97 = scmp.eq.s32.totalorder %s15, 0
    %p98 = por %p96, %p97
    %s99 = ssub.s32 %s16, %s28
    %s100 = ssub.s32 %s17, %s24
    %s101 = sor.u32 %s99, %s100
    %p102 = scmp.eq.s32.totalorder %s101, 0
    %s104 = sadd.s32 %s103, 1
    %s105 = scalar_select %p102, %s103, %s104
    %p108 = pneg %p102
    %p109 = scmp.eq.s32.totalorder %s9, 1
    %p110 = por %p108, %p109
    %p111 = scmp.ne.s32.totalorder %s103, %s106
    %p112 = scmp.eq.s32.totalorder %s9, 0
    %p113 = por %p111, %p112
    %p114 = scmp.ne.s32.totalorder %s103, %s106
    %p115 = scmp.eq.s32.totalorder %s14, 1
    %p116 = por %p114, %p115
    %p117 = scmp.ne.s32.totalorder %s106, %s107
    %p118 = scmp.eq.s32.totalorder %s14, 0
    %p119 = por %p117, %p118
    %p120 = scmp.ne.s32.totalorder %s106, %s107
    %p121 = scmp.eq.s32.totalorder %s15, 1
    %p122 = por %p120, %p121
    %p124 = scmp.ne.s32.totalorder %s107, %s123
    %p125 = scmp.eq.s32.totalorder %s15, 0
    %p126 = por %p124, %p125
    %p127 = scmp.le.s32.totalorder 1, %s9
    %p128 = scmp.lt.s32.totalorder %s9, 3
    %p129 = pnand %p127, %p128
    %p130 = pneg %p129
    // Predicated region
    $region9: #{backbone_base_forward.7} parent=5 // pred_check
      _
    $region10: #{backbone_base_forward.7} parent=5 // pred_check_branch
      %132 = sbr.rel (%p129) target = $region12
    $region11: #{backbone_base_forward.7} parent=5 // pred_region
      %s133 = ssub.s32 %s9, 1
      // Predicated region
      $region13: #{backbone_base_forward.7} parent=11 // pred_check
        %p134 = pneg %p70
      $region14: #{backbone_base_forward.7} parent=11 // pred_check_branch
        %136 = sbr.rel (%p134) target = $region16
      $region15: #{backbone_base_forward.7} parent=11 // pred_region
        _
      $region16: #{backbone_base_forward.7} parent=11 // pred_fallthru
        _
      // Predicated region
      $region17: #{backbone_base_forward.7} parent=11 // pred_check
        %p137 = pneg %p91
      $region18: #{backbone_base_forward.7} parent=11 // pred_check_branch
        %139 = sbr.rel (%p137) target = $region20
      $region19: #{backbone_base_forward.7} parent=11 // pred_region
        _
      $region20: #{backbone_base_forward.7} parent=11 // pred_fallthru
        _
    $region12: #{backbone_base_forward.7} parent=5 // pred_fallthru
      _
    %p140 = scmp.lt.s32.totalorder %s9, 2
    // Predicated region
    $region21: #{backbone_base_forward.7} parent=5 // pred_check
      %p141 = pneg %p140
    $region22: #{backbone_base_forward.7} parent=5 // pred_check_branch
      %143 = sbr.rel (%p141) target = $region24
    $region23: #{backbone_base_forward.7} parent=5 // pred_region
      // Predicated region
      $region25: #{backbone_base_forward.7} parent=23 // pred_check
        %p144 = pneg %p43
      $region26: #{backbone_base_forward.7} parent=23 // pred_check_branch
        %146 = sbr.rel (%p144) target = $region28
      $region27: #{backbone_base_forward.7} parent=23 // pred_region
        %p147 = scmp.lt.s32.totalorder %s16, 1
        %s148 = scalar_select %p147, %s16, 1
        %p149 = scmp.lt.s32.totalorder %s17, 0
        %s150 = scalar_select %p149, %s17, 0
        %s151 = smul.addr %s150, 2
        %s152 = smul.addr %s148, 2
        %s153 = sadd.s32 %s151, %s152
        %s154 = scalar_lea.vmem %s0, %s153
      $region28: #{backbone_base_forward.7} parent=23 // pred_fallthru
        _
    $region24: #{backbone_base_forward.7} parent=5 // pred_fallthru
      _
    %p155 = scmp.le.s32.totalorder 1, %s9
    %p156 = scmp.lt.s32.totalorder %s9, 3
    %p157 = pnand %p155, %p156
    %p158 = pneg %p157
    // Predicated region
    $region29: #{backbone_base_forward.7} parent=5 // pred_check
      _
    $region30: #{backbone_base_forward.7} parent=5 // pred_check_branch
      %160 = sbr.rel (%p157) target = $region32
    $region31: #{backbone_base_forward.7} parent=5 // pred_region
      %s161 = ssub.s32 %s9, 1
      %p162 = scmp.lt.s32.totalorder %s18, 1
      %s163 = scalar_select %p162, %s18, 1
      %p164 = scmp.lt.s32.totalorder %s19, 0
      %s165 = scalar_select %p164, %s19, 0
      %s166 = smul.addr %s165, 2
      %s167 = smul.addr %s163, 2
      %s168 = sadd.s32 %s166, %s167
      %s169 = scalar_lea.vmem %s0, %s168
      %p170 = pneg %p49
      %p171 = pneg %p46
      %p172 = pneg %p70
      %p173 = pneg %p67
      %p174 = pneg %p91
      %p175 = pneg %p88
      %p176 = pneg %p119
      %p177 = pneg %p116
      %p178 = scmp.lt.s32.totalorder %s18, 1
      %s179 = scalar_select %p178, %s18, 1
      %p180 = scmp.lt.s32.totalorder %s19, 0
      %s181 = scalar_select %p180, %s19, 0
      %s182 = sadd.s32 %s181, %s179
      %s183 = scalar_lea.vmem %s3, %s182
      %p184 = scmp.lt.s32.totalorder %s18, 1
      %s185 = scalar_select %p184, %s18, 1
      %p186 = scmp.lt.s32.totalorder %s19, 0
      %s187 = scalar_select %p186, %s19, 0
      %s188 = smul.addr %s187, 2
      %s189 = smul.addr %s185, 2
      %s190 = sadd.s32 %s188, %s189
      %s191 = scalar_lea.vmem %s0, %s190
      %p192 = scmp.lt.s32.totalorder %s18, 1
      %s193 = scalar_select %p192, %s18, 1
      %p194 = scmp.lt.s32.totalorder %s19, 0
      %s195 = scalar_select %p194, %s19, 0
      %s196 = sadd.s32 %s195, %s193
      %s197 = scalar_lea.vmem %s3, %s196
      %v199 = vld [vmem:[%s191] sm:$0x1]
      %s200 = scalar_lea.vmem %s191, 1
      %v201 = vld [vmem:[%s200] sm:$0x1]
      %v204 = vunpack.c.l.s4 1966171168
      %v205 = vunpack.c.0.s8 %v204
      %v206 = vlaneseq
      %v207 = vshrl.u32 %v206, 7
      %v208 = vsub.s32 %v205, %v207
      %v209 = vrot.slane %v199, %v208
      %v211 = vunpack.c.l.s4 1966171168
      %v212 = vunpack.c.0.s8 %v211
      %v213 = vlaneseq
      %v214 = vshrl.u32 %v213, 7
      %v215 = vsub.s32 %v212, %v214
      %v216 = vrot.slane %v209, %v215
      %v218 = vshrl.u32 %v216, 16
      %220 = vrot.lane.b32.xlu0 %v218, 64
      %v221 = vpop.permute.xlu0 %220
      %222 = vrot.lane.b32.xlu0 %v216, 32
      %v223 = vpop.permute.xlu0 %222
      %224 = vrot.lane.b32.xlu0 %v218, 96
      %v225 = vpop.permute.xlu0 %224
      %v228 = vunpack.c.l.s4 1966171168
      %v229 = vunpack.c.0.s8 %v228
      %v230 = vlaneseq
      %v231 = vshrl.u32 %v230, 7
      %v232 = vsub.s32 %v229, %v231
      %v233 = vrot.slane %v201, %v232
      %v235 = vunpack.c.l.s4 1966171168
      %v236 = vunpack.c.0.s8 %v235
      %v237 = vlaneseq
      %v238 = vshrl.u32 %v237, 7
      %v239 = vsub.s32 %v236, %v238
      %v240 = vrot.slane %v233, %v239
      %241 = vrot.lane.b32.xlu0 %v240, 64
      %v242 = vpop.permute.xlu0 %241
      %v244 = vshrl.u32 %v240, 16
      %vm246 = vcmask 261120
      %vm248 = vcmask 523264
      %v250 = vsel %vm248, %v199, %v221
      %vm251 = vcmask 785408
      %v253 = vsel %vm251, %v250, %v223
      %v256 = vsel %vm246, %v223, %v225
      %v258 = vsel %vm248, %v256, %v242
      %v259 = vsel %vm251, %v258, %v242
      %v261 = vld [vmem:[%s1] sm:$0xf]
      %v262 = vld [vmem:[%s1 + $0x4] sm:$0xf]
      %v263 = vld [vmem:[%s1 + $0x8] sm:$0xf]
      %v264 = vld [vmem:[%s1 + $0xc] sm:$0xf]
      %v265 = vld [vmem:[%s1 + $0x10] sm:$0xf]
      %v266 = vld [vmem:[%s1 + $0x14] sm:$0xf]
      %v267 = vld [vmem:[%s1 + $0x18] sm:$0xf]
      %v268 = vld [vmem:[%s1 + $0x1c] sm:$0xf]
      %v269 = vld [vmem:[%s1 + $0x20] sm:$0xf]
      %v270 = vld [vmem:[%s1 + $0x24] sm:$0xf]
      %v271 = vld [vmem:[%s1 + $0x28] sm:$0xf]
      %v272 = vld [vmem:[%s1 + $0x2c] sm:$0xf]
      %v273 = vld [vmem:[%s1 + $0x30] sm:$0xf]
      %v274 = vld [vmem:[%s1 + $0x34] sm:$0xf]
      %v275 = vld [vmem:[%s1 + $0x38] sm:$0xf]
      %v276 = vld [vmem:[%s1 + $0x3c] sm:$0xf]
      %v277 = vld [vmem:[%s1 + $0x40] sm:$0xf]
      %v278 = vld [vmem:[%s1 + $0x44] sm:$0xf]
      %v279 = vld [vmem:[%s1 + $0x48] sm:$0xf]
      %v280 = vld [vmem:[%s1 + $0x4c] sm:$0xf]
      %v281 = vld [vmem:[%s1 + $0x50] sm:$0xf]
      %v282 = vld [vmem:[%s1 + $0x54] sm:$0xf]
      %v283 = vld [vmem:[%s1 + $0x58] sm:$0xf]
      %v284 = vld [vmem:[%s1 + $0x5c] sm:$0xf]
      %v285 = vld [vmem:[%s1 + $0x60] sm:$0xf]
      %v286 = vld [vmem:[%s1 + $0x64] sm:$0xf]
      %v287 = vld [vmem:[%s1 + $0x68] sm:$0xf]
      %v288 = vld [vmem:[%s1 + $0x6c] sm:$0xf]
      %v289 = vld [vmem:[%s1 + $0x70] sm:$0xf]
      %v290 = vld [vmem:[%s1 + $0x74] sm:$0xf]
      %v291 = vld [vmem:[%s1 + $0x78] sm:$0xf]
      %v292 = vld [vmem:[%s1 + $0x7c] sm:$0xf]
      %v293 = vld [vmem:[%s1 + $0x80] sm:$0xf]
      %v294 = vld [vmem:[%s1 + $0x84] sm:$0xf]
      %v295 = vld [vmem:[%s1 + $0x88] sm:$0xf]
      %v296 = vld [vmem:[%s1 + $0x8c] sm:$0xf]
      %v297 = vld [vmem:[%s2] sm:$0x1]
      %v334 = vunpack.c.l.b16 %v261
      %v335 = vunpack.c.l.b16 %v262
      %v336 = vunpack.c.l.b16 %v263
      %v337 = vunpack.c.l.b16 %v264
      %v338 = vunpack.c.l.b16 %v265
      %v339 = vunpack.c.l.b16 %v266
      %v340 = vunpack.c.l.b16 %v267
      %v341 = vunpack.c.l.b16 %v268
      %v342 = vunpack.c.l.b16 %v269
      %v343 = vunpack.c.l.b16 %v270
      %v344 = vunpack.c.l.b16 %v271
      %v345 = vunpack.c.l.b16 %v272
      %v346 = vunpack.c.l.b16 %v273
      %v347 = vunpack.c.l.b16 %v274
      %v348 = vunpack.c.l.b16 %v275
      %v349 = vunpack.c.l.b16 %v276
      %v350 = vunpack.c.l.b16 %v277
      %v351 = vunpack.c.l.b16 %v278
      %v352 = vunpack.c.l.b16 %v279
      %v353 = vunpack.c.l.b16 %v280
      %v354 = vunpack.c.l.b16 %v281
      %v355 = vunpack.c.l.b16 %v282
      %v356 = vunpack.c.l.b16 %v283
      %v357 = vunpack.c.l.b16 %v284
      %v358 = vunpack.c.l.b16 %v285
      %v359 = vunpack.c.l.b16 %v286
      %v360 = vunpack.c.l.b16 %v287
      %v361 = vunpack.c.l.b16 %v288
      %v362 = vunpack.c.l.b16 %v289
      %v363 = vunpack.c.l.b16 %v290
      %v364 = vunpack.c.l.b16 %v291
      %v365 = vunpack.c.l.b16 %v292
      %v366 = vunpack.c.l.b16 %v293
      %v367 = vunpack.c.l.b16 %v294
      %v368 = vunpack.c.l.b16 %v295
      %v369 = vunpack.c.l.b16 %v296
      %v370 = vpack.c.b16 %v335, %v334
      %v371 = vpack.c.b16 %v337, %v336
      %v372 = vpack.c.b16 %v339, %v338
      %v373 = vpack.c.b16 %v341, %v340
      %v374 = vpack.c.b16 %v343, %v342
      %v375 = vpack.c.b16 %v345, %v344
      %v376 = vpack.c.b16 %v347, %v346
      %v377 = vpack.c.b16 %v349, %v348
      %v378 = vpack.c.b16 %v351, %v350
      %v379 = vpack.c.b16 %v353, %v352
      %v380 = vpack.c.b16 %v355, %v354
      %v381 = vpack.c.b16 %v357, %v356
      %v382 = vpack.c.b16 %v359, %v358
      %v383 = vpack.c.b16 %v361, %v360
      %v384 = vpack.c.b16 %v363, %v362
      %v385 = vpack.c.b16 %v365, %v364
      %v386 = vpack.c.b16 %v367, %v366
      %v387 = vpack.c.b16 %v369, %v368
      %v407 = vsel %vm246, %v244, 0
      %409 = vmatprep.subr.bf16.mxu0 0
      %410 = vmatpush1.bf16.msra.mxu0 %v370
      %411 = vmatprep.subr.bf16.mxu0 0
      %412 = vmatpush1.bf16.msra.mxu0 %v371
      %413 = vmatprep.subr.bf16.mxu0 0
      %414 = vmatpush1.bf16.msra.mxu0 %v372
      %415 = vmatprep.subr.bf16.mxu0 0
      %416 = vmatpush1.bf16.msra.mxu0 %v373
      %417 = vmatprep.subr.bf16.mxu0 0
      %418 = vmatpush1.bf16.msra.mxu0 %v374
      %419 = vmatprep.subr.bf16.mxu0 0
      %420 = vmatpush1.bf16.msra.mxu0 %v375
      %421 = vmatprep.subr.bf16.mxu0 0
      %422 = vmatpush1.bf16.msra.mxu0 %v376
      %423 = vmatprep.subr.bf16.mxu0 0
      %424 = vmatpush1.bf16.msra.mxu0 %v377
      %425 = vmatprep.subr.bf16.mxu0 0
      %426 = vmatpush1.bf16.msra.mxu0 %v378
      %427 = vmatprep.subr.bf16.mxu0 0
      %428 = vmatpush1.bf16.msra.mxu0 %v379
      %429 = vmatprep.subr.bf16.mxu0 0
      %430 = vmatpush1.bf16.msra.mxu0 %v380
      %431 = vmatprep.subr.bf16.mxu0 0
      %432 = vmatpush1.bf16.msra.mxu0 %v381
      %433 = vmatprep.subr.bf16.mxu0 0
      %434 = vmatpush1.bf16.msra.mxu0 %v382
      %435 = vmatprep.subr.bf16.mxu0 0
      %436 = vmatpush1.bf16.msra.mxu0 %v383
      %437 = vmatprep.subr.bf16.mxu0 0
      %438 = vmatpush1.bf16.msra.mxu0 %v384
      %439 = vmatprep.subr.bf16.mxu0 0
      %440 = vmatpush1.bf16.msra.mxu0 %v385
      %441 = vmatprep.mubr.bf16.mxu0 %v259
      %442 = vmatmul.mubr.bf16.gmra.mrb[0].mxu0 %v253
      %v443 = vpop.f32.mrb[0].mxu0
      %v444 = vadd.f32 %v297, %v443
      %v445 = vpop.f32.mrb[0].mxu0
      %v446 = vpop.f32.mrb[0].mxu0
      %v447 = vpop.f32.mrb[0].mxu0
      %448 = vdwg.mxu0
      %449 = vmatprep.subr.bf16.mxu0 0
      %450 = vmatpush1.bf16.msra.mxu0 %v386
      %451 = vmatprep.subr.bf16.mxu0 0
      %452 = vmatpush1.bf16.msra.mxu0 %v387
      %453 = vmatprep.subr.bf16.mxu0 0
      %454 = vmatpush1.bf16.msra.mxu0 0
      %455 = vmatprep.subr.bf16.mxu0 0
      %456 = vmatpush1.bf16.msra.mxu0 0
      %457 = vmatprep.subr.bf16.mxu0 0
      %458 = vmatpush1.bf16.msra.mxu0 0
      %459 = vmatprep.subr.bf16.mxu0 0
      %460 = vmatpush1.bf16.msra.mxu0 0
      %461 = vmatprep.subr.bf16.mxu0 0
      %462 = vmatpush1.bf16.msra.mxu0 0
      %463 = vmatprep.subr.bf16.mxu0 0
      %464 = vmatpush1.bf16.msra.mxu0 0
      %465 = vmatprep.subr.bf16.mxu0 0
      %466 = vmatpush1.bf16.msra.mxu0 0
      %467 = vmatprep.subr.bf16.mxu0 0
      %468 = vmatpush1.bf16.msra.mxu0 0
      %469 = vmatprep.subr.bf16.mxu0 0
      %470 = vmatpush1.bf16.msra.mxu0 0
      %471 = vmatprep.subr.bf16.mxu0 0
      %472 = vmatpush1.bf16.msra.mxu0 0
      %473 = vmatprep.subr.bf16.mxu0 0
      %474 = vmatpush1.bf16.msra.mxu0 0
      %475 = vmatprep.subr.bf16.mxu0 0
      %476 = vmatpush1.bf16.msra.mxu0 0
      %477 = vmatprep.subr.bf16.mxu0 0
      %478 = vmatpush1.bf16.msra.mxu0 0
      %479 = vmatprep.subr.bf16.mxu0 0
      %480 = vmatpush1.bf16.msra.mxu0 0
      %481 = vmatprep.mubr.bf16.mxu0 0
      %482 = vmatmul.mubr.bf16.gmra.mrb[0].mxu0 %v407
      %v483 = vpop.f32.mrb[0].mxu0
      %v484 = vadd.f32 %v444, %v483
      %v485 = vpop.f32.mrb[0].mxu0
      %v486 = vpop.f32.mrb[0].mxu0
      %v487 = vpop.f32.mrb[0].mxu0
      %488 = vdwg.mxu0
      %v489 = vmax.f32 %v484, 0.0
      %v490 = vpack.c.bf16 %v489, %v489
      %vm491 = vcmask 253952
      %vm492 = vsmask.f32 256
      %vm493 = vmand %vm491, %vm492
      %v494 = vld [vmem:[%s197] sm:$0x1]
      %v495 = vsel %vm493, %v490, %v494
      %496 = vst [vmem:[%s197] sm:$0x1] %v495
      %p497 = scmp.lt.s32.totalorder %s18, 1
      %s498 = scalar_select %p497, %s18, 1
      %p499 = scmp.lt.s32.totalorder %s19, 0
      %s500 = scalar_select %p499, %s19, 0
      %s501 = sadd.s32 %s500, %s498
      %s502 = scalar_lea.vmem %s3, %s501
      // Predicated region
      $region33: #{backbone_base_forward.7} parent=31 // pred_check
        %p503 = pneg %p116
      $region34: #{backbone_base_forward.7} parent=31 // pred_check_branch
        %505 = sbr.rel (%p503) target = $region36
      $region35: #{backbone_base_forward.7} parent=31 // pred_region
        _
      $region36: #{backbone_base_forward.7} parent=31 // pred_fallthru
        _
    $region32: #{backbone_base_forward.7} parent=5 // pred_fallthru
      _
    %p506 = scmp.le.s32.totalorder 2, %s9
    // Predicated region
    $region37: #{backbone_base_forward.7} parent=5 // pred_check
      %p507 = pneg %p506
    $region38: #{backbone_base_forward.7} parent=5 // pred_check_branch
      %509 = sbr.rel (%p507) target = $region40
    $region39: #{backbone_base_forward.7} parent=5 // pred_region
      %s510 = ssub.s32 %s9, 2
      // Predicated region
      $region41: #{backbone_base_forward.7} parent=39 // pred_check
        %p511 = pneg %p122
      $region42: #{backbone_base_forward.7} parent=39 // pred_check_branch
        %513 = sbr.rel (%p511) target = $region44
      $region43: #{backbone_base_forward.7} parent=39 // pred_region
        %p514 = scmp.lt.s32.totalorder %s20, 1
        %s515 = scalar_select %p514, %s20, 1
        %p516 = scmp.lt.s32.totalorder %s21, 0
        %s517 = scalar_select %p516, %s21, 0
        %s518 = sadd.s32 %s517, %s515
        %s519 = scalar_lea.vmem %s3, %s518
      $region44: #{backbone_base_forward.7} parent=39 // pred_fallthru
        _
    $region40: #{backbone_base_forward.7} parent=5 // pred_fallthru
      _
  $region6: #{backbone_base_forward.7} parent=0 // loop_footer
    %s13 = sadd.s32 1, %s9
  $region7: #{backbone_base_forward.7} parent=0 // loop_footer_branch
    %8 = sbr.rel target = $region3
  $region8: #{backbone_base_forward.7} parent=0 // loop_exit
    _

</llo_original>
